<compile_context>
chip_gen: v6e
topology: v6e:2x2x1
jax: 0.10.0
libtpu: 0.0.40
codegen_flags: <defaults>
</compile_context>

<pallas_src>
import jax
import jax.numpy as jnp
import numpy as np
from jax import lax
from jax.experimental import pallas as pl
from jax.experimental.pallas import tpu as pltpu


def _bilstm_chunk_kernel(x_f_ref, x_b_ref, w_ref, b_ref,
                         out_f_ref, out_b_ref,
                         h_sc, c_sc):
    """One grid step = one chunk of T timesteps for BOTH LSTM directions.

    x_f_ref: (T, B, E) bf16 chunk in forward time order (rows c*T .. c*T+T-1).
    x_b_ref: (T, B, E) bf16 mirrored chunk (rows L-(c+1)*T .. L-c*T-1).
    w_ref:   (2E+2H, 8H) bf16 fused block-diagonal weights, rows ordered
             [x_f, x_b, h_f, h_b], columns [i_f i_b f_f f_b g_f g_b o_f o_b].
    b_ref:   (1, 8H) f32 fused bias (b_ih + b_hh), same column order.
    h_sc/c_sc: (B, 2H) f32 VMEM state [fwd | bwd], persistent across chunks.
    """
    T, B, E = x_f_ref.shape
    H = out_f_ref.shape[-1]
    c_idx = pl.program_id(0)

    @pl.when(c_idx == 0)
    def _init():
        h_sc[...] = jnp.zeros_like(h_sc)
        c_sc[...] = jnp.zeros_like(c_sc)

    # Hoisted out of the inner loop: weight load and bias broadcast.
    w = w_ref[...]                                      # (2E+2H, 8H) bf16
    bias = jnp.broadcast_to(b_ref[...], (B, 8 * H))     # (B, 8H) f32

    def step(i, carry):
        h, c = carry                                    # (B, 2H) f32 each
        xf = x_f_ref[i]                                 # timestep c*T + i
        xb = x_b_ref[T - 1 - i]                         # timestep L-1-(c*T+i)

        # One MXU issue per timestep: joint fwd+bwd gates.
        inp = jnp.concatenate([xf, xb, h.astype(jnp.bfloat16)], axis=-1)
        gates = jnp.dot(inp, w, preferred_element_type=jnp.float32) + bias

        # Gate-type blocks are 2H wide (fwd half then bwd half); PyTorch
        # gate order i, f, g, o.
        i_g = jax.nn.sigmoid(gates[:, 0 * H:2 * H])
        f_g = jax.nn.sigmoid(gates[:, 2 * H:4 * H])
        g_g = jnp.tanh(gates[:, 4 * H:6 * H])
        o_g = jax.nn.sigmoid(gates[:, 6 * H:8 * H])

        c_new = f_g * c + i_g * g_g                     # (B, 2H) f32
        h_new = o_g * jnp.tanh(c_new)                   # (B, 2H) f32

        out_f_ref[i] = h_new[:, :H]                     # forward  hidden, t = c*T+i
        out_b_ref[T - 1 - i] = h_new[:, H:]             # backward hidden, t = L-1-(c*T+i)
        return h_new, c_new

    h_last, c_last = lax.fori_loop(0, T, step, (h_sc[...], c_sc[...]),
                                   unroll=True)
    h_sc[...] = h_last
    c_sc[...] = c_last


def _fuse_bilstm_weights(params):
    """Pre-transpose + fuse + direction-interleave the LSTM weights/biases."""
    E = params["wih_f"].shape[1]
    H = params["whh_f"].shape[1]

    def gate_split(w_t):                               # (rows, 4H) -> (rows, 4, H)
        return w_t.reshape(w_t.shape[0], 4, H)

    wx_f = gate_split(params["wih_f"].T)               # (E, 4, H)
    wx_b = gate_split(params["wih_b"].T)
    wh_f = gate_split(params["whh_f"].T)               # (H, 4, H)
    wh_b = gate_split(params["whh_b"].T)
    zx = jnp.zeros_like(wx_f)
    zh = jnp.zeros_like(wh_f)

    # Rows [x_f, x_b, h_f, h_b]; columns [i_f i_b f_f f_b g_f g_b o_f o_b].
    w_joint = jnp.concatenate([
        jnp.stack([wx_f, zx], axis=2),
        jnp.stack([zx, wx_b], axis=2),
        jnp.stack([wh_f, zh], axis=2),
        jnp.stack([zh, wh_b], axis=2),
    ], axis=0).reshape(2 * E + 2 * H, 8 * H)

    b_joint = jnp.stack([params["b_f"].reshape(4, H),
                         params["b_b"].reshape(4, H)], axis=1).reshape(1, 8 * H)
    return w_joint.astype(jnp.bfloat16), b_joint.astype(jnp.float32)


def discriminative_lstm_forward(src, params, *, chunk_timesteps=None,
                                return_encoder_outputs=False):
    """src: (seq_len, batch) int32 token ids. Returns y (batch, 1)."""
    x = jnp.take(params["embedding"], src, axis=0).astype(jnp.bfloat16)  # (L,B,E)
    # nn.Dropout(0.2) == identity in eval mode.
    L, B, E = x.shape
    H = params["whh_f"].shape[1]

    T = L if chunk_timesteps is None else min(chunk_timesteps, L)
    assert L % T == 0, "seq_len must be divisible by chunk_timesteps"
    nc = L // T

    w_joint, b_joint = _fuse_bilstm_weights(params)

    # Explicit VMEM budget: double-buffered x views/outputs + weights + state.
    need = (2 * 2 * T * B * E * 2            # two bf16 x views, 2x buffered
            + 2 * 2 * T * B * H * 4          # two f32 outputs,  2x buffered
            + 2 * w_joint.size * 2 + 2 * b_joint.size * 4
            + 2 * B * 2 * H * 4)             # h/c scratch
    vmem_limit = int(min(max(4 * need, 16 * 1024 * 1024), 32 * 1024 * 1024))

    grid_spec = pltpu.PrefetchScalarGridSpec(
        num_scalar_prefetch=0,
        grid=(nc,),
        in_specs=[
            pl.BlockSpec((T, B, E), lambda c: (c, 0, 0)),            # x, fwd chunks
            pl.BlockSpec((T, B, E), lambda c: (nc - 1 - c, 0, 0)),   # x, bwd chunks
            pl.BlockSpec(w_joint.shape, lambda c: (0, 0)),           # fused weights
            pl.BlockSpec(b_joint.shape, lambda c: (0, 0)),           # fused bias
        ],
        out_specs=[
            pl.BlockSpec((T, B, H), lambda c: (c, 0, 0)),            # fwd hidden
            pl.BlockSpec((T, B, H), lambda c: (nc - 1 - c, 0, 0)),   # bwd hidden
        ],
        scratch_shapes=[pltpu.VMEM((B, 2 * H), jnp.float32),         # h = [h_f|h_b]
                        pltpu.VMEM((B, 2 * H), jnp.float32)],        # c = [c_f|c_b]
    )

    out_f, out_b = pl.pallas_call(
        _bilstm_chunk_kernel,
        grid_spec=grid_spec,
        out_shape=(jax.ShapeDtypeStruct((L, B, H), jnp.float32),
                   jax.ShapeDtypeStruct((L, B, H), jnp.float32)),
        compiler_params=pltpu.CompilerParams(
            dimension_semantics=("arbitrary",),
            vmem_limit_bytes=vmem_limit),
    )(x, x, w_joint, b_joint)

    # nn.Linear(2H, 1) head in the wrapper.
    # encoder_outputs[-1] = concat(h_fwd at t=L-1, h_bwd at t=L-1).
    enc_last = jnp.concatenate([out_f[-1], out_b[-1]], axis=-1)      # (B, 2H)
    y = enc_last @ params["wfc"].T + params["bfc"]                   # (B, 1)

    if return_encoder_outputs:
        enc = jnp.concatenate([out_f, out_b], axis=-1)               # (L, B, 2H)
        return y, enc
    return y


def init_params(key, vocab, emb_dim, hid_dim):
    """Deterministic synthetic parameters (shapes follow the PyTorch module)."""
    ks = jax.random.split(key, 11)
    s = 1.0 / np.sqrt(hid_dim)
    u = lambda k, shape: jax.random.uniform(k, shape, jnp.float32, -s, s)
    H, E = hid_dim, emb_dim
    return dict(
        embedding=jax.random.normal(ks[0], (vocab, E), jnp.float32),
        wih_f=u(ks[1], (4 * H, E)),
        whh_f=u(ks[2], (4 * H, H)),
        b_f=u(ks[3], (1, 4 * H)) + u(ks[4], (1, 4 * H)),   # b_ih + b_hh
        wih_b=u(ks[5], (4 * H, E)),
        whh_b=u(ks[6], (4 * H, H)),
        b_b=u(ks[7], (1, 4 * H)) + u(ks[8], (1, 4 * H)),
        wfc=u(ks[9], (1, 2 * H)),                           # nn.Linear(2H, 1)
        bfc=u(ks[10], (1, 1)),
    )


def reference_forward(src, params):
    """Pure-JAX f32 reference (lax.scan LSTM) for correctness checking."""
    x = jnp.take(params["embedding"], src, axis=0).astype(jnp.float32)
    L, B, E = x.shape
    H = params["whh_f"].shape[1]

    def make_step(wih, whh, b):
        def step(carry, xt):
            h, c = carry
            gates = xt @ wih.T + h @ whh.T + b[0]
            i, f, g, o = jnp.split(gates, 4, axis=-1)
            i, f, o = jax.nn.sigmoid(i), jax.nn.sigmoid(f), jax.nn.sigmoid(o)
            g = jnp.tanh(g)
            c = f * c + i * g
            h = o * jnp.tanh(c)
            return (h, c), h
        return step

    init = (jnp.zeros((B, H), jnp.float32), jnp.zeros((B, H), jnp.float32))
    _, hs_f = lax.scan(make_step(params["wih_f"], params["whh_f"], params["b_f"]),
                       init, x)
    _, hs_b = lax.scan(make_step(params["wih_b"], params["whh_b"], params["b_b"]),
                       init, x, reverse=True)
    enc = jnp.concatenate([hs_f, hs_b], axis=-1)            # (L, B, 2H)
    y = enc[-1] @ params["wfc"].T + params["bfc"]           # (B, 1)
    return y, enc


if __name__ == "__main__":
    vocab, emb_dim, hid_dim, seq_len, batch = 50, 32, 32, 8, 2

    key = jax.random.PRNGKey(0)
    k_params, k_src = jax.random.split(key)
    params = init_params(k_params, vocab, emb_dim, hid_dim)
    src = jax.random.randint(k_src, (seq_len, batch), 0, vocab, dtype=jnp.int32)

    y_ref, enc_ref = reference_forward(src, params)

    # Check both the single-grid-step fast path (whole sequence in one chunk)
    # and the chunked path (exercises the cross-chunk h/c state carry).
    for chunk in (seq_len, seq_len // 2):
        y, enc = discriminative_lstm_forward(src, params, chunk_timesteps=chunk,
                                             return_encoder_outputs=True)
        jax.block_until_ready((y, enc))
        # bf16 matmul operands vs. f32 reference -> modest tolerances.
        np.testing.assert_allclose(np.asarray(enc), np.asarray(enc_ref),
                                   atol=3e-2, rtol=3e-2)
        np.testing.assert_allclose(np.asarray(y), np.asarray(y_ref),
                                   atol=5e-2, rtol=5e-2)

    print("KERNEL_OK")
</pallas_src>

<mosaic_0001>
module attributes {stable_mosaic.version = 11 : i64} {
  func.func @_bilstm_chunk_kernel(%arg0: i32, %arg1: memref<8x2x32xbf16, #tpu.memory_space<vmem>>, %arg2: memref<8x2x32xbf16, #tpu.memory_space<vmem>>, %arg3: memref<128x256xbf16, #tpu.memory_space<vmem>>, %arg4: memref<1x256xf32, #tpu.memory_space<vmem>>, %arg5: memref<8x2x32xf32, #tpu.memory_space<vmem>>, %arg6: memref<8x2x32xf32, #tpu.memory_space<vmem>>, %arg7: memref<2x64xf32, #tpu.memory_space<vmem>>, %arg8: memref<2x64xf32, #tpu.memory_space<vmem>>) attributes {dimension_semantics = [#tpu.dimension_semantics<arbitrary>], iteration_bounds = array<i64: 1>, scalar_prefetch = 0 : i64, scratch_operands = 2 : i64, tpu.core_type = #tpu.core_type<tc>, window_params = [{transform_indices = @transform_0, window_bounds = array<i64: 8, 2, 32>}, {transform_indices = @transform_1, window_bounds = array<i64: 8, 2, 32>}, {pipeline_mode = #tpu.pipeline_mode<synchronous>, transform_indices = @transform_2, window_bounds = array<i64: 128, 256>}, {pipeline_mode = #tpu.pipeline_mode<synchronous>, transform_indices = @transform_3, window_bounds = array<i64: 1, 256>}, {transform_indices = @transform_4, window_bounds = array<i64: 8, 2, 32>}, {transform_indices = @transform_5, window_bounds = array<i64: 8, 2, 32>}]} {
    %c0_i32 = arith.constant 0 : i32
    %0 = arith.cmpi eq, %arg0, %c0_i32 : i32
    %1 = arith.extui %0 : i1 to i32
    %c0_i32_0 = arith.constant 0 : i32
    %2 = arith.cmpi ne, %1, %c0_i32_0 : i32
    scf.if %2 {
      %cst_124 = arith.constant 0.000000e+00 : f32
      %387 = vector.broadcast %cst_124 : f32 to vector<2x64xf32>
      %c0_125 = arith.constant 0 : index
      %c0_126 = arith.constant 0 : index
      %388 = vector.load %arg7[%c0_125, %c0_126] : memref<2x64xf32, #tpu.memory_space<vmem>>, vector<2x64xf32>
      tpu.vector_store %arg7[%c0_125, %c0_126], %387 {strides = array<i32>} : memref<2x64xf32, #tpu.memory_space<vmem>>, vector<2x64xf32>,
      %cst_127 = arith.constant 0.000000e+00 : f32
      %389 = vector.broadcast %cst_127 : f32 to vector<2x64xf32>
      %c0_128 = arith.constant 0 : index
      %c0_129 = arith.constant 0 : index
      %390 = vector.load %arg8[%c0_128, %c0_129] : memref<2x64xf32, #tpu.memory_space<vmem>>, vector<2x64xf32>
      tpu.vector_store %arg8[%c0_128, %c0_129], %389 {strides = array<i32>} : memref<2x64xf32, #tpu.memory_space<vmem>>, vector<2x64xf32>,
    } else {
    }
    %c0 = arith.constant 0 : index
    %c0_1 = arith.constant 0 : index
    %3 = vector.load %arg3[%c0, %c0_1] : memref<128x256xbf16, #tpu.memory_space<vmem>>, vector<128x256xbf16>
    %c0_2 = arith.constant 0 : index
    %c0_3 = arith.constant 0 : index
    %4 = vector.load %arg4[%c0_2, %c0_3] : memref<1x256xf32, #tpu.memory_space<vmem>>, vector<1x256xf32>
    %5 = vector.shape_cast %4 : vector<1x256xf32> to vector<1x256xf32>
    %6 = vector.broadcast %5 : vector<1x256xf32> to vector<2x256xf32>
    %c0_4 = arith.constant 0 : index
    %c0_5 = arith.constant 0 : index
    %7 = vector.load %arg7[%c0_4, %c0_5] : memref<2x64xf32, #tpu.memory_space<vmem>>, vector<2x64xf32>
    %c0_6 = arith.constant 0 : index
    %c0_7 = arith.constant 0 : index
    %8 = vector.load %arg8[%c0_6, %c0_7] : memref<2x64xf32, #tpu.memory_space<vmem>>, vector<2x64xf32>
    %c0_i32_8 = arith.constant 0 : i32
    %9 = arith.index_cast %c0_i32_8 : i32 to index
    %c0_9 = arith.constant 0 : index
    %c0_10 = arith.constant 0 : index
    %10 = vector.load %arg1[%9, %c0_9, %c0_10] : memref<8x2x32xbf16, #tpu.memory_space<vmem>>, vector<1x2x32xbf16>
    %11 = vector.shape_cast %10 : vector<1x2x32xbf16> to vector<2x32xbf16>
    %c7_i32 = arith.constant 7 : i32
    %12 = arith.subi %c7_i32, %c0_i32_8 : i32
    %13 = arith.index_cast %12 : i32 to index
    %c0_11 = arith.constant 0 : index
    %c0_12 = arith.constant 0 : index
    %14 = vector.load %arg2[%13, %c0_11, %c0_12] : memref<8x2x32xbf16, #tpu.memory_space<vmem>>, vector<1x2x32xbf16>
    %15 = vector.shape_cast %14 : vector<1x2x32xbf16> to vector<2x32xbf16>
    %16 = arith.truncf %7 : vector<2x64xf32> to vector<2x64xbf16>
    %17 = tpu.concatenate %11, %15, %16 in 1 : vector<2x32xbf16>, vector<2x32xbf16>, vector<2x64xbf16> -> vector<2x128xbf16>
    %cst = arith.constant dense<0.000000e+00> : vector<2x256xf32>
    %18 = tpu.matmul %17, %3, %cst {dimension_numbers = #tpu.dot_dimension_numbers<[1], [0], [0], [1], [0, 0, 1, 1], [], []>} : vector<2x128xbf16>, vector<128x256xbf16>, vector<2x256xf32> -> vector<2x256xf32>
    %19 = arith.addf %18, %6 : vector<2x256xf32>
    %20 = vector.extract_strided_slice %19 {offsets = [0, 0], sizes = [2, 64], strides = [1, 1]} : vector<2x256xf32> to vector<2x64xf32>
    %21 = arith.negf %20 : vector<2x64xf32>
    %22 = math.exp %21 : vector<2x64xf32>
    %cst_13 = arith.constant 1.000000e+00 : f32
    %23 = vector.broadcast %cst_13 : f32 to vector<2x64xf32>
    %24 = arith.addf %23, %22 : vector<2x64xf32>
    %25 = arith.divf %23, %24 : vector<2x64xf32>
    %26 = vector.extract_strided_slice %19 {offsets = [0, 64], sizes = [2, 64], strides = [1, 1]} : vector<2x256xf32> to vector<2x64xf32>
    %27 = arith.negf %26 : vector<2x64xf32>
    %28 = math.exp %27 : vector<2x64xf32>
    %cst_14 = arith.constant 1.000000e+00 : f32
    %29 = vector.broadcast %cst_14 : f32 to vector<2x64xf32>
    %30 = arith.addf %29, %28 : vector<2x64xf32>
    %31 = arith.divf %29, %30 : vector<2x64xf32>
    %32 = vector.extract_strided_slice %19 {offsets = [0, 128], sizes = [2, 64], strides = [1, 1]} : vector<2x256xf32> to vector<2x64xf32>
    %33 = math.tanh %32 : vector<2x64xf32>
    %34 = vector.extract_strided_slice %19 {offsets = [0, 192], sizes = [2, 64], strides = [1, 1]} : vector<2x256xf32> to vector<2x64xf32>
    %35 = arith.negf %34 : vector<2x64xf32>
    %36 = math.exp %35 : vector<2x64xf32>
    %cst_15 = arith.constant 1.000000e+00 : f32
    %37 = vector.broadcast %cst_15 : f32 to vector<2x64xf32>
    %38 = arith.addf %37, %36 : vector<2x64xf32>
    %39 = arith.divf %37, %38 : vector<2x64xf32>
    %40 = arith.mulf %31, %8 : vector<2x64xf32>
    %41 = arith.mulf %25, %33 : vector<2x64xf32>
    %42 = arith.addf %40, %41 : vector<2x64xf32>
    %43 = math.tanh %42 : vector<2x64xf32>
    %44 = arith.mulf %39, %43 : vector<2x64xf32>
    %45 = vector.extract_strided_slice %44 {offsets = [0, 0], sizes = [2, 32], strides = [1, 1]} : vector<2x64xf32> to vector<2x32xf32>
    %46 = arith.index_cast %c0_i32_8 : i32 to index
    %c0_16 = arith.constant 0 : index
    %c0_17 = arith.constant 0 : index
    %47 = vector.load %arg5[%46, %c0_16, %c0_17] : memref<8x2x32xf32, #tpu.memory_space<vmem>>, vector<1x2x32xf32>
    %48 = vector.shape_cast %47 : vector<1x2x32xf32> to vector<2x32xf32>
    %49 = vector.shape_cast %45 : vector<2x32xf32> to vector<1x2x32xf32>
    tpu.vector_store %arg5[%46, %c0_16, %c0_17], %49 {strides = array<i32>} : memref<8x2x32xf32, #tpu.memory_space<vmem>>, vector<1x2x32xf32>,
    %50 = vector.extract_strided_slice %44 {offsets = [0, 32], sizes = [2, 32], strides = [1, 1]} : vector<2x64xf32> to vector<2x32xf32>
    %c7_i32_18 = arith.constant 7 : i32
    %51 = arith.subi %c7_i32_18, %c0_i32_8 : i32
    %52 = arith.index_cast %51 : i32 to index
    %c0_19 = arith.constant 0 : index
    %c0_20 = arith.constant 0 : index
    %53 = vector.load %arg6[%52, %c0_19, %c0_20] : memref<8x2x32xf32, #tpu.memory_space<vmem>>, vector<1x2x32xf32>
    %54 = vector.shape_cast %53 : vector<1x2x32xf32> to vector<2x32xf32>
    %55 = vector.shape_cast %50 : vector<2x32xf32> to vector<1x2x32xf32>
    tpu.vector_store %arg6[%52, %c0_19, %c0_20], %55 {strides = array<i32>} : memref<8x2x32xf32, #tpu.memory_space<vmem>>, vector<1x2x32xf32>,
    %c1_i32 = arith.constant 1 : i32
    %56 = arith.index_cast %c1_i32 : i32 to index
    %c0_21 = arith.constant 0 : index
    %c0_22 = arith.constant 0 : index
    %57 = vector.load %arg1[%56, %c0_21, %c0_22] : memref<8x2x32xbf16, #tpu.memory_space<vmem>>, vector<1x2x32xbf16>
    %58 = vector.shape_cast %57 : vector<1x2x32xbf16> to vector<2x32xbf16>
    %c7_i32_23 = arith.constant 7 : i32
    %59 = arith.subi %c7_i32_23, %c1_i32 : i32
    %60 = arith.index_cast %59 : i32 to index
    %c0_24 = arith.constant 0 : index
    %c0_25 = arith.constant 0 : index
    %61 = vector.load %arg2[%60, %c0_24, %c0_25] : memref<8x2x32xbf16, #tpu.memory_space<vmem>>, vector<1x2x32xbf16>
    %62 = vector.shape_cast %61 : vector<1x2x32xbf16> to vector<2x32xbf16>
    %63 = arith.truncf %44 : vector<2x64xf32> to vector<2x64xbf16>
    %64 = tpu.concatenate %58, %62, %63 in 1 : vector<2x32xbf16>, vector<2x32xbf16>, vector<2x64xbf16> -> vector<2x128xbf16>
    %cst_26 = arith.constant dense<0.000000e+00> : vector<2x256xf32>
    %65 = tpu.matmul %64, %3, %cst_26 {dimension_numbers = #tpu.dot_dimension_numbers<[1], [0], [0], [1], [0, 0, 1, 1], [], []>} : vector<2x128xbf16>, vector<128x256xbf16>, vector<2x256xf32> -> vector<2x256xf32>
    %66 = arith.addf %65, %6 : vector<2x256xf32>
    %67 = vector.extract_strided_slice %66 {offsets = [0, 0], sizes = [2, 64], strides = [1, 1]} : vector<2x256xf32> to vector<2x64xf32>
    %68 = arith.negf %67 : vector<2x64xf32>
    %69 = math.exp %68 : vector<2x64xf32>
    %cst_27 = arith.constant 1.000000e+00 : f32
    %70 = vector.broadcast %cst_27 : f32 to vector<2x64xf32>
    %71 = arith.addf %70, %69 : vector<2x64xf32>
    %72 = arith.divf %70, %71 : vector<2x64xf32>
    %73 = vector.extract_strided_slice %66 {offsets = [0, 64], sizes = [2, 64], strides = [1, 1]} : vector<2x256xf32> to vector<2x64xf32>
    %74 = arith.negf %73 : vector<2x64xf32>
    %75 = math.exp %74 : vector<2x64xf32>
    %cst_28 = arith.constant 1.000000e+00 : f32
    %76 = vector.broadcast %cst_28 : f32 to vector<2x64xf32>
    %77 = arith.addf %76, %75 : vector<2x64xf32>
    %78 = arith.divf %76, %77 : vector<2x64xf32>
    %79 = vector.extract_strided_slice %66 {offsets = [0, 128], sizes = [2, 64], strides = [1, 1]} : vector<2x256xf32> to vector<2x64xf32>
    %80 = math.tanh %79 : vector<2x64xf32>
    %81 = vector.extract_strided_slice %66 {offsets = [0, 192], sizes = [2, 64], strides = [1, 1]} : vector<2x256xf32> to vector<2x64xf32>
    %82 = arith.negf %81 : vector<2x64xf32>
    %83 = math.exp %82 : vector<2x64xf32>
    %cst_29 = arith.constant 1.000000e+00 : f32
    %84 = vector.broadcast %cst_29 : f32 to vector<2x64xf32>
    %85 = arith.addf %84, %83 : vector<2x64xf32>
    %86 = arith.divf %84, %85 : vector<2x64xf32>
    %87 = arith.mulf %78, %42 : vector<2x64xf32>
    %88 = arith.mulf %72, %80 : vector<2x64xf32>
    %89 = arith.addf %87, %88 : vector<2x64xf32>
    %90 = math.tanh %89 : vector<2x64xf32>
    %91 = arith.mulf %86, %90 : vector<2x64xf32>
    %92 = vector.extract_strided_slice %91 {offsets = [0, 0], sizes = [2, 32], strides = [1, 1]} : vector<2x64xf32> to vector<2x32xf32>
    %93 = arith.index_cast %c1_i32 : i32 to index
    %c0_30 = arith.constant 0 : index
    %c0_31 = arith.constant 0 : index
    %94 = vector.load %arg5[%93, %c0_30, %c0_31] : memref<8x2x32xf32, #tpu.memory_space<vmem>>, vector<1x2x32xf32>
    %95 = vector.shape_cast %94 : vector<1x2x32xf32> to vector<2x32xf32>
    %96 = vector.shape_cast %92 : vector<2x32xf32> to vector<1x2x32xf32>
    tpu.vector_store %arg5[%93, %c0_30, %c0_31], %96 {strides = array<i32>} : memref<8x2x32xf32, #tpu.memory_space<vmem>>, vector<1x2x32xf32>,
    %97 = vector.extract_strided_slice %91 {offsets = [0, 32], sizes = [2, 32], strides = [1, 1]} : vector<2x64xf32> to vector<2x32xf32>
    %c7_i32_32 = arith.constant 7 : i32
    %98 = arith.subi %c7_i32_32, %c1_i32 : i32
    %99 = arith.index_cast %98 : i32 to index
    %c0_33 = arith.constant 0 : index
    %c0_34 = arith.constant 0 : index
    %100 = vector.load %arg6[%99, %c0_33, %c0_34] : memref<8x2x32xf32, #tpu.memory_space<vmem>>, vector<1x2x32xf32>
    %101 = vector.shape_cast %100 : vector<1x2x32xf32> to vector<2x32xf32>
    %102 = vector.shape_cast %97 : vector<2x32xf32> to vector<1x2x32xf32>
    tpu.vector_store %arg6[%99, %c0_33, %c0_34], %102 {strides = array<i32>} : memref<8x2x32xf32, #tpu.memory_space<vmem>>, vector<1x2x32xf32>,
    %c2_i32 = arith.constant 2 : i32
    %103 = arith.index_cast %c2_i32 : i32 to index
    %c0_35 = arith.constant 0 : index
    %c0_36 = arith.constant 0 : index
    %104 = vector.load %arg1[%103, %c0_35, %c0_36] : memref<8x2x32xbf16, #tpu.memory_space<vmem>>, vector<1x2x32xbf16>
    %105 = vector.shape_cast %104 : vector<1x2x32xbf16> to vector<2x32xbf16>
    %c7_i32_37 = arith.constant 7 : i32
    %106 = arith.subi %c7_i32_37, %c2_i32 : i32
    %107 = arith.index_cast %106 : i32 to index
    %c0_38 = arith.constant 0 : index
    %c0_39 = arith.constant 0 : index
    %108 = vector.load %arg2[%107, %c0_38, %c0_39] : memref<8x2x32xbf16, #tpu.memory_space<vmem>>, vector<1x2x32xbf16>
    %109 = vector.shape_cast %108 : vector<1x2x32xbf16> to vector<2x32xbf16>
    %110 = arith.truncf %91 : vector<2x64xf32> to vector<2x64xbf16>
    %111 = tpu.concatenate %105, %109, %110 in 1 : vector<2x32xbf16>, vector<2x32xbf16>, vector<2x64xbf16> -> vector<2x128xbf16>
    %cst_40 = arith.constant dense<0.000000e+00> : vector<2x256xf32>
    %112 = tpu.matmul %111, %3, %cst_40 {dimension_numbers = #tpu.dot_dimension_numbers<[1], [0], [0], [1], [0, 0, 1, 1], [], []>} : vector<2x128xbf16>, vector<128x256xbf16>, vector<2x256xf32> -> vector<2x256xf32>
    %113 = arith.addf %112, %6 : vector<2x256xf32>
    %114 = vector.extract_strided_slice %113 {offsets = [0, 0], sizes = [2, 64], strides = [1, 1]} : vector<2x256xf32> to vector<2x64xf32>
    %115 = arith.negf %114 : vector<2x64xf32>
    %116 = math.exp %115 : vector<2x64xf32>
    %cst_41 = arith.constant 1.000000e+00 : f32
    %117 = vector.broadcast %cst_41 : f32 to vector<2x64xf32>
    %118 = arith.addf %117, %116 : vector<2x64xf32>
    %119 = arith.divf %117, %118 : vector<2x64xf32>
    %120 = vector.extract_strided_slice %113 {offsets = [0, 64], sizes = [2, 64], strides = [1, 1]} : vector<2x256xf32> to vector<2x64xf32>
    %121 = arith.negf %120 : vector<2x64xf32>
    %122 = math.exp %121 : vector<2x64xf32>
    %cst_42 = arith.constant 1.000000e+00 : f32
    %123 = vector.broadcast %cst_42 : f32 to vector<2x64xf32>
    %124 = arith.addf %123, %122 : vector<2x64xf32>
    %125 = arith.divf %123, %124 : vector<2x64xf32>
    %126 = vector.extract_strided_slice %113 {offsets = [0, 128], sizes = [2, 64], strides = [1, 1]} : vector<2x256xf32> to vector<2x64xf32>
    %127 = math.tanh %126 : vector<2x64xf32>
    %128 = vector.extract_strided_slice %113 {offsets = [0, 192], sizes = [2, 64], strides = [1, 1]} : vector<2x256xf32> to vector<2x64xf32>
    %129 = arith.negf %128 : vector<2x64xf32>
    %130 = math.exp %129 : vector<2x64xf32>
    %cst_43 = arith.constant 1.000000e+00 : f32
    %131 = vector.broadcast %cst_43 : f32 to vector<2x64xf32>
    %132 = arith.addf %131, %130 : vector<2x64xf32>
    %133 = arith.divf %131, %132 : vector<2x64xf32>
    %134 = arith.mulf %125, %89 : vector<2x64xf32>
    %135 = arith.mulf %119, %127 : vector<2x64xf32>
    %136 = arith.addf %134, %135 : vector<2x64xf32>
    %137 = math.tanh %136 : vector<2x64xf32>
    %138 = arith.mulf %133, %137 : vector<2x64xf32>
    %139 = vector.extract_strided_slice %138 {offsets = [0, 0], sizes = [2, 32], strides = [1, 1]} : vector<2x64xf32> to vector<2x32xf32>
    %140 = arith.index_cast %c2_i32 : i32 to index
    %c0_44 = arith.constant 0 : index
    %c0_45 = arith.constant 0 : index
    %141 = vector.load %arg5[%140, %c0_44, %c0_45] : memref<8x2x32xf32, #tpu.memory_space<vmem>>, vector<1x2x32xf32>
    %142 = vector.shape_cast %141 : vector<1x2x32xf32> to vector<2x32xf32>
    %143 = vector.shape_cast %139 : vector<2x32xf32> to vector<1x2x32xf32>
    tpu.vector_store %arg5[%140, %c0_44, %c0_45], %143 {strides = array<i32>} : memref<8x2x32xf32, #tpu.memory_space<vmem>>, vector<1x2x32xf32>,
    %144 = vector.extract_strided_slice %138 {offsets = [0, 32], sizes = [2, 32], strides = [1, 1]} : vector<2x64xf32> to vector<2x32xf32>
    %c7_i32_46 = arith.constant 7 : i32
    %145 = arith.subi %c7_i32_46, %c2_i32 : i32
    %146 = arith.index_cast %145 : i32 to index
    %c0_47 = arith.constant 0 : index
    %c0_48 = arith.constant 0 : index
    %147 = vector.load %arg6[%146, %c0_47, %c0_48] : memref<8x2x32xf32, #tpu.memory_space<vmem>>, vector<1x2x32xf32>
    %148 = vector.shape_cast %147 : vector<1x2x32xf32> to vector<2x32xf32>
    %149 = vector.shape_cast %144 : vector<2x32xf32> to vector<1x2x32xf32>
    tpu.vector_store %arg6[%146, %c0_47, %c0_48], %149 {strides = array<i32>} : memref<8x2x32xf32, #tpu.memory_space<vmem>>, vector<1x2x32xf32>,
    %c3_i32 = arith.constant 3 : i32
    %150 = arith.index_cast %c3_i32 : i32 to index
    %c0_49 = arith.constant 0 : index
    %c0_50 = arith.constant 0 : index
    %151 = vector.load %arg1[%150, %c0_49, %c0_50] : memref<8x2x32xbf16, #tpu.memory_space<vmem>>, vector<1x2x32xbf16>
    %152 = vector.shape_cast %151 : vector<1x2x32xbf16> to vector<2x32xbf16>
    %c7_i32_51 = arith.constant 7 : i32
    %153 = arith.subi %c7_i32_51, %c3_i32 : i32
    %154 = arith.index_cast %153 : i32 to index
    %c0_52 = arith.constant 0 : index
    %c0_53 = arith.constant 0 : index
    %155 = vector.load %arg2[%154, %c0_52, %c0_53] : memref<8x2x32xbf16, #tpu.memory_space<vmem>>, vector<1x2x32xbf16>
    %156 = vector.shape_cast %155 : vector<1x2x32xbf16> to vector<2x32xbf16>
    %157 = arith.truncf %138 : vector<2x64xf32> to vector<2x64xbf16>
    %158 = tpu.concatenate %152, %156, %157 in 1 : vector<2x32xbf16>, vector<2x32xbf16>, vector<2x64xbf16> -> vector<2x128xbf16>
    %cst_54 = arith.constant dense<0.000000e+00> : vector<2x256xf32>
    %159 = tpu.matmul %158, %3, %cst_54 {dimension_numbers = #tpu.dot_dimension_numbers<[1], [0], [0], [1], [0, 0, 1, 1], [], []>} : vector<2x128xbf16>, vector<128x256xbf16>, vector<2x256xf32> -> vector<2x256xf32>
    %160 = arith.addf %159, %6 : vector<2x256xf32>
    %161 = vector.extract_strided_slice %160 {offsets = [0, 0], sizes = [2, 64], strides = [1, 1]} : vector<2x256xf32> to vector<2x64xf32>
    %162 = arith.negf %161 : vector<2x64xf32>
    %163 = math.exp %162 : vector<2x64xf32>
    %cst_55 = arith.constant 1.000000e+00 : f32
    %164 = vector.broadcast %cst_55 : f32 to vector<2x64xf32>
    %165 = arith.addf %164, %163 : vector<2x64xf32>
    %166 = arith.divf %164, %165 : vector<2x64xf32>
    %167 = vector.extract_strided_slice %160 {offsets = [0, 64], sizes = [2, 64], strides = [1, 1]} : vector<2x256xf32> to vector<2x64xf32>
    %168 = arith.negf %167 : vector<2x64xf32>
    %169 = math.exp %168 : vector<2x64xf32>
    %cst_56 = arith.constant 1.000000e+00 : f32
    %170 = vector.broadcast %cst_56 : f32 to vector<2x64xf32>
    %171 = arith.addf %170, %169 : vector<2x64xf32>
    %172 = arith.divf %170, %171 : vector<2x64xf32>
    %173 = vector.extract_strided_slice %160 {offsets = [0, 128], sizes = [2, 64], strides = [1, 1]} : vector<2x256xf32> to vector<2x64xf32>
    %174 = math.tanh %173 : vector<2x64xf32>
    %175 = vector.extract_strided_slice %160 {offsets = [0, 192], sizes = [2, 64], strides = [1, 1]} : vector<2x256xf32> to vector<2x64xf32>
    %176 = arith.negf %175 : vector<2x64xf32>
    %177 = math.exp %176 : vector<2x64xf32>
    %cst_57 = arith.constant 1.000000e+00 : f32
    %178 = vector.broadcast %cst_57 : f32 to vector<2x64xf32>
    %179 = arith.addf %178, %177 : vector<2x64xf32>
    %180 = arith.divf %178, %179 : vector<2x64xf32>
    %181 = arith.mulf %172, %136 : vector<2x64xf32>
    %182 = arith.mulf %166, %174 : vector<2x64xf32>
    %183 = arith.addf %181, %182 : vector<2x64xf32>
    %184 = math.tanh %183 : vector<2x64xf32>
    %185 = arith.mulf %180, %184 : vector<2x64xf32>
    %186 = vector.extract_strided_slice %185 {offsets = [0, 0], sizes = [2, 32], strides = [1, 1]} : vector<2x64xf32> to vector<2x32xf32>
    %187 = arith.index_cast %c3_i32 : i32 to index
    %c0_58 = arith.constant 0 : index
    %c0_59 = arith.constant 0 : index
    %188 = vector.load %arg5[%187, %c0_58, %c0_59] : memref<8x2x32xf32, #tpu.memory_space<vmem>>, vector<1x2x32xf32>
    %189 = vector.shape_cast %188 : vector<1x2x32xf32> to vector<2x32xf32>
    %190 = vector.shape_cast %186 : vector<2x32xf32> to vector<1x2x32xf32>
    tpu.vector_store %arg5[%187, %c0_58, %c0_59], %190 {strides = array<i32>} : memref<8x2x32xf32, #tpu.memory_space<vmem>>, vector<1x2x32xf32>,
    %191 = vector.extract_strided_slice %185 {offsets = [0, 32], sizes = [2, 32], strides = [1, 1]} : vector<2x64xf32> to vector<2x32xf32>
    %c7_i32_60 = arith.constant 7 : i32
    %192 = arith.subi %c7_i32_60, %c3_i32 : i32
    %193 = arith.index_cast %192 : i32 to index
    %c0_61 = arith.constant 0 : index
    %c0_62 = arith.constant 0 : index
    %194 = vector.load %arg6[%193, %c0_61, %c0_62] : memref<8x2x32xf32, #tpu.memory_space<vmem>>, vector<1x2x32xf32>
    %195 = vector.shape_cast %194 : vector<1x2x32xf32> to vector<2x32xf32>
    %196 = vector.shape_cast %191 : vector<2x32xf32> to vector<1x2x32xf32>
    tpu.vector_store %arg6[%193, %c0_61, %c0_62], %196 {strides = array<i32>} : memref<8x2x32xf32, #tpu.memory_space<vmem>>, vector<1x2x32xf32>,
    %c4_i32 = arith.constant 4 : i32
    %197 = arith.index_cast %c4_i32 : i32 to index
    %c0_63 = arith.constant 0 : index
    %c0_64 = arith.constant 0 : index
    %198 = vector.load %arg1[%197, %c0_63, %c0_64] : memref<8x2x32xbf16, #tpu.memory_space<vmem>>, vector<1x2x32xbf16>
    %199 = vector.shape_cast %198 : vector<1x2x32xbf16> to vector<2x32xbf16>
    %c7_i32_65 = arith.constant 7 : i32
    %200 = arith.subi %c7_i32_65, %c4_i32 : i32
    %201 = arith.index_cast %200 : i32 to index
    %c0_66 = arith.constant 0 : index
    %c0_67 = arith.constant 0 : index
    %202 = vector.load %arg2[%201, %c0_66, %c0_67] : memref<8x2x32xbf16, #tpu.memory_space<vmem>>, vector<1x2x32xbf16>
    %203 = vector.shape_cast %202 : vector<1x2x32xbf16> to vector<2x32xbf16>
    %204 = arith.truncf %185 : vector<2x64xf32> to vector<2x64xbf16>
    %205 = tpu.concatenate %199, %203, %204 in 1 : vector<2x32xbf16>, vector<2x32xbf16>, vector<2x64xbf16> -> vector<2x128xbf16>
    %cst_68 = arith.constant dense<0.000000e+00> : vector<2x256xf32>
    %206 = tpu.matmul %205, %3, %cst_68 {dimension_numbers = #tpu.dot_dimension_numbers<[1], [0], [0], [1], [0, 0, 1, 1], [], []>} : vector<2x128xbf16>, vector<128x256xbf16>, vector<2x256xf32> -> vector<2x256xf32>
    %207 = arith.addf %206, %6 : vector<2x256xf32>
    %208 = vector.extract_strided_slice %207 {offsets = [0, 0], sizes = [2, 64], strides = [1, 1]} : vector<2x256xf32> to vector<2x64xf32>
    %209 = arith.negf %208 : vector<2x64xf32>
    %210 = math.exp %209 : vector<2x64xf32>
    %cst_69 = arith.constant 1.000000e+00 : f32
    %211 = vector.broadcast %cst_69 : f32 to vector<2x64xf32>
    %212 = arith.addf %211, %210 : vector<2x64xf32>
    %213 = arith.divf %211, %212 : vector<2x64xf32>
    %214 = vector.extract_strided_slice %207 {offsets = [0, 64], sizes = [2, 64], strides = [1, 1]} : vector<2x256xf32> to vector<2x64xf32>
    %215 = arith.negf %214 : vector<2x64xf32>
    %216 = math.exp %215 : vector<2x64xf32>
    %cst_70 = arith.constant 1.000000e+00 : f32
    %217 = vector.broadcast %cst_70 : f32 to vector<2x64xf32>
    %218 = arith.addf %217, %216 : vector<2x64xf32>
    %219 = arith.divf %217, %218 : vector<2x64xf32>
    %220 = vector.extract_strided_slice %207 {offsets = [0, 128], sizes = [2, 64], strides = [1, 1]} : vector<2x256xf32> to vector<2x64xf32>
    %221 = math.tanh %220 : vector<2x64xf32>
    %222 = vector.extract_strided_slice %207 {offsets = [0, 192], sizes = [2, 64], strides = [1, 1]} : vector<2x256xf32> to vector<2x64xf32>
    %223 = arith.negf %222 : vector<2x64xf32>
    %224 = math.exp %223 : vector<2x64xf32>
    %cst_71 = arith.constant 1.000000e+00 : f32
    %225 = vector.broadcast %cst_71 : f32 to vector<2x64xf32>
    %226 = arith.addf %225, %224 : vector<2x64xf32>
    %227 = arith.divf %225, %226 : vector<2x64xf32>
    %228 = arith.mulf %219, %183 : vector<2x64xf32>
    %229 = arith.mulf %213, %221 : vector<2x64xf32>
    %230 = arith.addf %228, %229 : vector<2x64xf32>
    %231 = math.tanh %230 : vector<2x64xf32>
    %232 = arith.mulf %227, %231 : vector<2x64xf32>
    %233 = vector.extract_strided_slice %232 {offsets = [0, 0], sizes = [2, 32], strides = [1, 1]} : vector<2x64xf32> to vector<2x32xf32>
    %234 = arith.index_cast %c4_i32 : i32 to index
    %c0_72 = arith.constant 0 : index
    %c0_73 = arith.constant 0 : index
    %235 = vector.load %arg5[%234, %c0_72, %c0_73] : memref<8x2x32xf32, #tpu.memory_space<vmem>>, vector<1x2x32xf32>
    %236 = vector.shape_cast %235 : vector<1x2x32xf32> to vector<2x32xf32>
    %237 = vector.shape_cast %233 : vector<2x32xf32> to vector<1x2x32xf32>
    tpu.vector_store %arg5[%234, %c0_72, %c0_73], %237 {strides = array<i32>} : memref<8x2x32xf32, #tpu.memory_space<vmem>>, vector<1x2x32xf32>,
    %238 = vector.extract_strided_slice %232 {offsets = [0, 32], sizes = [2, 32], strides = [1, 1]} : vector<2x64xf32> to vector<2x32xf32>
    %c7_i32_74 = arith.constant 7 : i32
    %239 = arith.subi %c7_i32_74, %c4_i32 : i32
    %240 = arith.index_cast %239 : i32 to index
    %c0_75 = arith.constant 0 : index
    %c0_76 = arith.constant 0 : index
    %241 = vector.load %arg6[%240, %c0_75, %c0_76] : memref<8x2x32xf32, #tpu.memory_space<vmem>>, vector<1x2x32xf32>
    %242 = vector.shape_cast %241 : vector<1x2x32xf32> to vector<2x32xf32>
    %243 = vector.shape_cast %238 : vector<2x32xf32> to vector<1x2x32xf32>
    tpu.vector_store %arg6[%240, %c0_75, %c0_76], %243 {strides = array<i32>} : memref<8x2x32xf32, #tpu.memory_space<vmem>>, vector<1x2x32xf32>,
    %c5_i32 = arith.constant 5 : i32
    %244 = arith.index_cast %c5_i32 : i32 to index
    %c0_77 = arith.constant 0 : index
    %c0_78 = arith.constant 0 : index
    %245 = vector.load %arg1[%244, %c0_77, %c0_78] : memref<8x2x32xbf16, #tpu.memory_space<vmem>>, vector<1x2x32xbf16>
    %246 = vector.shape_cast %245 : vector<1x2x32xbf16> to vector<2x32xbf16>
    %c7_i32_79 = arith.constant 7 : i32
    %247 = arith.subi %c7_i32_79, %c5_i32 : i32
    %248 = arith.index_cast %247 : i32 to index
    %c0_80 = arith.constant 0 : index
    %c0_81 = arith.constant 0 : index
    %249 = vector.load %arg2[%248, %c0_80, %c0_81] : memref<8x2x32xbf16, #tpu.memory_space<vmem>>, vector<1x2x32xbf16>
    %250 = vector.shape_cast %249 : vector<1x2x32xbf16> to vector<2x32xbf16>
    %251 = arith.truncf %232 : vector<2x64xf32> to vector<2x64xbf16>
    %252 = tpu.concatenate %246, %250, %251 in 1 : vector<2x32xbf16>, vector<2x32xbf16>, vector<2x64xbf16> -> vector<2x128xbf16>
    %cst_82 = arith.constant dense<0.000000e+00> : vector<2x256xf32>
    %253 = tpu.matmul %252, %3, %cst_82 {dimension_numbers = #tpu.dot_dimension_numbers<[1], [0], [0], [1], [0, 0, 1, 1], [], []>} : vector<2x128xbf16>, vector<128x256xbf16>, vector<2x256xf32> -> vector<2x256xf32>
    %254 = arith.addf %253, %6 : vector<2x256xf32>
    %255 = vector.extract_strided_slice %254 {offsets = [0, 0], sizes = [2, 64], strides = [1, 1]} : vector<2x256xf32> to vector<2x64xf32>
    %256 = arith.negf %255 : vector<2x64xf32>
    %257 = math.exp %256 : vector<2x64xf32>
    %cst_83 = arith.constant 1.000000e+00 : f32
    %258 = vector.broadcast %cst_83 : f32 to vector<2x64xf32>
    %259 = arith.addf %258, %257 : vector<2x64xf32>
    %260 = arith.divf %258, %259 : vector<2x64xf32>
    %261 = vector.extract_strided_slice %254 {offsets = [0, 64], sizes = [2, 64], strides = [1, 1]} : vector<2x256xf32> to vector<2x64xf32>
    %262 = arith.negf %261 : vector<2x64xf32>
    %263 = math.exp %262 : vector<2x64xf32>
    %cst_84 = arith.constant 1.000000e+00 : f32
    %264 = vector.broadcast %cst_84 : f32 to vector<2x64xf32>
    %265 = arith.addf %264, %263 : vector<2x64xf32>
    %266 = arith.divf %264, %265 : vector<2x64xf32>
    %267 = vector.extract_strided_slice %254 {offsets = [0, 128], sizes = [2, 64], strides = [1, 1]} : vector<2x256xf32> to vector<2x64xf32>
    %268 = math.tanh %267 : vector<2x64xf32>
    %269 = vector.extract_strided_slice %254 {offsets = [0, 192], sizes = [2, 64], strides = [1, 1]} : vector<2x256xf32> to vector<2x64xf32>
    %270 = arith.negf %269 : vector<2x64xf32>
    %271 = math.exp %270 : vector<2x64xf32>
    %cst_85 = arith.constant 1.000000e+00 : f32
    %272 = vector.broadcast %cst_85 : f32 to vector<2x64xf32>
    %273 = arith.addf %272, %271 : vector<2x64xf32>
    %274 = arith.divf %272, %273 : vector<2x64xf32>
    %275 = arith.mulf %266, %230 : vector<2x64xf32>
    %276 = arith.mulf %260, %268 : vector<2x64xf32>
    %277 = arith.addf %275, %276 : vector<2x64xf32>
    %278 = math.tanh %277 : vector<2x64xf32>
    %279 = arith.mulf %274, %278 : vector<2x64xf32>
    %280 = vector.extract_strided_slice %279 {offsets = [0, 0], sizes = [2, 32], strides = [1, 1]} : vector<2x64xf32> to vector<2x32xf32>
    %281 = arith.index_cast %c5_i32 : i32 to index
    %c0_86 = arith.constant 0 : index
    %c0_87 = arith.constant 0 : index
    %282 = vector.load %arg5[%281, %c0_86, %c0_87] : memref<8x2x32xf32, #tpu.memory_space<vmem>>, vector<1x2x32xf32>
    %283 = vector.shape_cast %282 : vector<1x2x32xf32> to vector<2x32xf32>
    %284 = vector.shape_cast %280 : vector<2x32xf32> to vector<1x2x32xf32>
    tpu.vector_store %arg5[%281, %c0_86, %c0_87], %284 {strides = array<i32>} : memref<8x2x32xf32, #tpu.memory_space<vmem>>, vector<1x2x32xf32>,
    %285 = vector.extract_strided_slice %279 {offsets = [0, 32], sizes = [2, 32], strides = [1, 1]} : vector<2x64xf32> to vector<2x32xf32>
    %c7_i32_88 = arith.constant 7 : i32
    %286 = arith.subi %c7_i32_88, %c5_i32 : i32
    %287 = arith.index_cast %286 : i32 to index
    %c0_89 = arith.constant 0 : index
    %c0_90 = arith.constant 0 : index
    %288 = vector.load %arg6[%287, %c0_89, %c0_90] : memref<8x2x32xf32, #tpu.memory_space<vmem>>, vector<1x2x32xf32>
    %289 = vector.shape_cast %288 : vector<1x2x32xf32> to vector<2x32xf32>
    %290 = vector.shape_cast %285 : vector<2x32xf32> to vector<1x2x32xf32>
    tpu.vector_store %arg6[%287, %c0_89, %c0_90], %290 {strides = array<i32>} : memref<8x2x32xf32, #tpu.memory_space<vmem>>, vector<1x2x32xf32>,
    %c6_i32 = arith.constant 6 : i32
    %291 = arith.index_cast %c6_i32 : i32 to index
    %c0_91 = arith.constant 0 : index
    %c0_92 = arith.constant 0 : index
    %292 = vector.load %arg1[%291, %c0_91, %c0_92] : memref<8x2x32xbf16, #tpu.memory_space<vmem>>, vector<1x2x32xbf16>
    %293 = vector.shape_cast %292 : vector<1x2x32xbf16> to vector<2x32xbf16>
    %c7_i32_93 = arith.constant 7 : i32
    %294 = arith.subi %c7_i32_93, %c6_i32 : i32
    %295 = arith.index_cast %294 : i32 to index
    %c0_94 = arith.constant 0 : index
    %c0_95 = arith.constant 0 : index
    %296 = vector.load %arg2[%295, %c0_94, %c0_95] : memref<8x2x32xbf16, #tpu.memory_space<vmem>>, vector<1x2x32xbf16>
    %297 = vector.shape_cast %296 : vector<1x2x32xbf16> to vector<2x32xbf16>
    %298 = arith.truncf %279 : vector<2x64xf32> to vector<2x64xbf16>
    %299 = tpu.concatenate %293, %297, %298 in 1 : vector<2x32xbf16>, vector<2x32xbf16>, vector<2x64xbf16> -> vector<2x128xbf16>
    %cst_96 = arith.constant dense<0.000000e+00> : vector<2x256xf32>
    %300 = tpu.matmul %299, %3, %cst_96 {dimension_numbers = #tpu.dot_dimension_numbers<[1], [0], [0], [1], [0, 0, 1, 1], [], []>} : vector<2x128xbf16>, vector<128x256xbf16>, vector<2x256xf32> -> vector<2x256xf32>
    %301 = arith.addf %300, %6 : vector<2x256xf32>
    %302 = vector.extract_strided_slice %301 {offsets = [0, 0], sizes = [2, 64], strides = [1, 1]} : vector<2x256xf32> to vector<2x64xf32>
    %303 = arith.negf %302 : vector<2x64xf32>
    %304 = math.exp %303 : vector<2x64xf32>
    %cst_97 = arith.constant 1.000000e+00 : f32
    %305 = vector.broadcast %cst_97 : f32 to vector<2x64xf32>
    %306 = arith.addf %305, %304 : vector<2x64xf32>
    %307 = arith.divf %305, %306 : vector<2x64xf32>
    %308 = vector.extract_strided_slice %301 {offsets = [0, 64], sizes = [2, 64], strides = [1, 1]} : vector<2x256xf32> to vector<2x64xf32>
    %309 = arith.negf %308 : vector<2x64xf32>
    %310 = math.exp %309 : vector<2x64xf32>
    %cst_98 = arith.constant 1.000000e+00 : f32
    %311 = vector.broadcast %cst_98 : f32 to vector<2x64xf32>
    %312 = arith.addf %311, %310 : vector<2x64xf32>
    %313 = arith.divf %311, %312 : vector<2x64xf32>
    %314 = vector.extract_strided_slice %301 {offsets = [0, 128], sizes = [2, 64], strides = [1, 1]} : vector<2x256xf32> to vector<2x64xf32>
    %315 = math.tanh %314 : vector<2x64xf32>
    %316 = vector.extract_strided_slice %301 {offsets = [0, 192], sizes = [2, 64], strides = [1, 1]} : vector<2x256xf32> to vector<2x64xf32>
    %317 = arith.negf %316 : vector<2x64xf32>
    %318 = math.exp %317 : vector<2x64xf32>
    %cst_99 = arith.constant 1.000000e+00 : f32
    %319 = vector.broadcast %cst_99 : f32 to vector<2x64xf32>
    %320 = arith.addf %319, %318 : vector<2x64xf32>
    %321 = arith.divf %319, %320 : vector<2x64xf32>
    %322 = arith.mulf %313, %277 : vector<2x64xf32>
    %323 = arith.mulf %307, %315 : vector<2x64xf32>
    %324 = arith.addf %322, %323 : vector<2x64xf32>
    %325 = math.tanh %324 : vector<2x64xf32>
    %326 = arith.mulf %321, %325 : vector<2x64xf32>
    %327 = vector.extract_strided_slice %326 {offsets = [0, 0], sizes = [2, 32], strides = [1, 1]} : vector<2x64xf32> to vector<2x32xf32>
    %328 = arith.index_cast %c6_i32 : i32 to index
    %c0_100 = arith.constant 0 : index
    %c0_101 = arith.constant 0 : index
    %329 = vector.load %arg5[%328, %c0_100, %c0_101] : memref<8x2x32xf32, #tpu.memory_space<vmem>>, vector<1x2x32xf32>
    %330 = vector.shape_cast %329 : vector<1x2x32xf32> to vector<2x32xf32>
    %331 = vector.shape_cast %327 : vector<2x32xf32> to vector<1x2x32xf32>
    tpu.vector_store %arg5[%328, %c0_100, %c0_101], %331 {strides = array<i32>} : memref<8x2x32xf32, #tpu.memory_space<vmem>>, vector<1x2x32xf32>,
    %332 = vector.extract_strided_slice %326 {offsets = [0, 32], sizes = [2, 32], strides = [1, 1]} : vector<2x64xf32> to vector<2x32xf32>
    %c7_i32_102 = arith.constant 7 : i32
    %333 = arith.subi %c7_i32_102, %c6_i32 : i32
    %334 = arith.index_cast %333 : i32 to index
    %c0_103 = arith.constant 0 : index
    %c0_104 = arith.constant 0 : index
    %335 = vector.load %arg6[%334, %c0_103, %c0_104] : memref<8x2x32xf32, #tpu.memory_space<vmem>>, vector<1x2x32xf32>
    %336 = vector.shape_cast %335 : vector<1x2x32xf32> to vector<2x32xf32>
    %337 = vector.shape_cast %332 : vector<2x32xf32> to vector<1x2x32xf32>
    tpu.vector_store %arg6[%334, %c0_103, %c0_104], %337 {strides = array<i32>} : memref<8x2x32xf32, #tpu.memory_space<vmem>>, vector<1x2x32xf32>,
    %c7_i32_105 = arith.constant 7 : i32
    %338 = arith.index_cast %c7_i32_105 : i32 to index
    %c0_106 = arith.constant 0 : index
    %c0_107 = arith.constant 0 : index
    %339 = vector.load %arg1[%338, %c0_106, %c0_107] : memref<8x2x32xbf16, #tpu.memory_space<vmem>>, vector<1x2x32xbf16>
    %340 = vector.shape_cast %339 : vector<1x2x32xbf16> to vector<2x32xbf16>
    %c7_i32_108 = arith.constant 7 : i32
    %341 = arith.subi %c7_i32_108, %c7_i32_105 : i32
    %342 = arith.index_cast %341 : i32 to index
    %c0_109 = arith.constant 0 : index
    %c0_110 = arith.constant 0 : index
    %343 = vector.load %arg2[%342, %c0_109, %c0_110] : memref<8x2x32xbf16, #tpu.memory_space<vmem>>, vector<1x2x32xbf16>
    %344 = vector.shape_cast %343 : vector<1x2x32xbf16> to vector<2x32xbf16>
    %345 = arith.truncf %326 : vector<2x64xf32> to vector<2x64xbf16>
    %346 = tpu.concatenate %340, %344, %345 in 1 : vector<2x32xbf16>, vector<2x32xbf16>, vector<2x64xbf16> -> vector<2x128xbf16>
    %cst_111 = arith.constant dense<0.000000e+00> : vector<2x256xf32>
    %347 = tpu.matmul %346, %3, %cst_111 {dimension_numbers = #tpu.dot_dimension_numbers<[1], [0], [0], [1], [0, 0, 1, 1], [], []>} : vector<2x128xbf16>, vector<128x256xbf16>, vector<2x256xf32> -> vector<2x256xf32>
    %348 = arith.addf %347, %6 : vector<2x256xf32>
    %349 = vector.extract_strided_slice %348 {offsets = [0, 0], sizes = [2, 64], strides = [1, 1]} : vector<2x256xf32> to vector<2x64xf32>
    %350 = arith.negf %349 : vector<2x64xf32>
    %351 = math.exp %350 : vector<2x64xf32>
    %cst_112 = arith.constant 1.000000e+00 : f32
    %352 = vector.broadcast %cst_112 : f32 to vector<2x64xf32>
    %353 = arith.addf %352, %351 : vector<2x64xf32>
    %354 = arith.divf %352, %353 : vector<2x64xf32>
    %355 = vector.extract_strided_slice %348 {offsets = [0, 64], sizes = [2, 64], strides = [1, 1]} : vector<2x256xf32> to vector<2x64xf32>
    %356 = arith.negf %355 : vector<2x64xf32>
    %357 = math.exp %356 : vector<2x64xf32>
    %cst_113 = arith.constant 1.000000e+00 : f32
    %358 = vector.broadcast %cst_113 : f32 to vector<2x64xf32>
    %359 = arith.addf %358, %357 : vector<2x64xf32>
    %360 = arith.divf %358, %359 : vector<2x64xf32>
    %361 = vector.extract_strided_slice %348 {offsets = [0, 128], sizes = [2, 64], strides = [1, 1]} : vector<2x256xf32> to vector<2x64xf32>
    %362 = math.tanh %361 : vector<2x64xf32>
    %363 = vector.extract_strided_slice %348 {offsets = [0, 192], sizes = [2, 64], strides = [1, 1]} : vector<2x256xf32> to vector<2x64xf32>
    %364 = arith.negf %363 : vector<2x64xf32>
    %365 = math.exp %364 : vector<2x64xf32>
    %cst_114 = arith.constant 1.000000e+00 : f32
    %366 = vector.broadcast %cst_114 : f32 to vector<2x64xf32>
    %367 = arith.addf %366, %365 : vector<2x64xf32>
    %368 = arith.divf %366, %367 : vector<2x64xf32>
    %369 = arith.mulf %360, %324 : vector<2x64xf32>
    %370 = arith.mulf %354, %362 : vector<2x64xf32>
    %371 = arith.addf %369, %370 : vector<2x64xf32>
    %372 = math.tanh %371 : vector<2x64xf32>
    %373 = arith.mulf %368, %372 : vector<2x64xf32>
    %374 = vector.extract_strided_slice %373 {offsets = [0, 0], sizes = [2, 32], strides = [1, 1]} : vector<2x64xf32> to vector<2x32xf32>
    %375 = arith.index_cast %c7_i32_105 : i32 to index
    %c0_115 = arith.constant 0 : index
    %c0_116 = arith.constant 0 : index
    %376 = vector.load %arg5[%375, %c0_115, %c0_116] : memref<8x2x32xf32, #tpu.memory_space<vmem>>, vector<1x2x32xf32>
    %377 = vector.shape_cast %376 : vector<1x2x32xf32> to vector<2x32xf32>
    %378 = vector.shape_cast %374 : vector<2x32xf32> to vector<1x2x32xf32>
    tpu.vector_store %arg5[%375, %c0_115, %c0_116], %378 {strides = array<i32>} : memref<8x2x32xf32, #tpu.memory_space<vmem>>, vector<1x2x32xf32>,
    %379 = vector.extract_strided_slice %373 {offsets = [0, 32], sizes = [2, 32], strides = [1, 1]} : vector<2x64xf32> to vector<2x32xf32>
    %c7_i32_117 = arith.constant 7 : i32
    %380 = arith.subi %c7_i32_117, %c7_i32_105 : i32
    %381 = arith.index_cast %380 : i32 to index
    %c0_118 = arith.constant 0 : index
    %c0_119 = arith.constant 0 : index
    %382 = vector.load %arg6[%381, %c0_118, %c0_119] : memref<8x2x32xf32, #tpu.memory_space<vmem>>, vector<1x2x32xf32>
    %383 = vector.shape_cast %382 : vector<1x2x32xf32> to vector<2x32xf32>
    %384 = vector.shape_cast %379 : vector<2x32xf32> to vector<1x2x32xf32>
    tpu.vector_store %arg6[%381, %c0_118, %c0_119], %384 {strides = array<i32>} : memref<8x2x32xf32, #tpu.memory_space<vmem>>, vector<1x2x32xf32>,
    %c8_i32 = arith.constant 8 : i32
    %c0_120 = arith.constant 0 : index
    %c0_121 = arith.constant 0 : index
    %385 = vector.load %arg7[%c0_120, %c0_121] : memref<2x64xf32, #tpu.memory_space<vmem>>, vector<2x64xf32>
    tpu.vector_store %arg7[%c0_120, %c0_121], %373 {strides = array<i32>} : memref<2x64xf32, #tpu.memory_space<vmem>>, vector<2x64xf32>,
    %c0_122 = arith.constant 0 : index
    %c0_123 = arith.constant 0 : index
    %386 = vector.load %arg8[%c0_122, %c0_123] : memref<2x64xf32, #tpu.memory_space<vmem>>, vector<2x64xf32>
    tpu.vector_store %arg8[%c0_122, %c0_123], %371 {strides = array<i32>} : memref<2x64xf32, #tpu.memory_space<vmem>>, vector<2x64xf32>,
    return
  }
  func.func @transform_0(%arg0: i32) -> (i32, i32, i32) {
    %c0_i32 = arith.constant 0 : i32
    %c0_i32_0 = arith.constant 0 : i32
    %c0_i32_1 = arith.constant 0 : i32
    return %arg0, %c0_i32, %c0_i32_0 : i32, i32, i32
  }
  func.func @transform_1(%arg0: i32) -> (i32, i32, i32) {
    %c0_i32 = arith.constant 0 : i32
    %0 = arith.subi %c0_i32, %arg0 : i32
    %c0_i32_0 = arith.constant 0 : i32
    %c0_i32_1 = arith.constant 0 : i32
    %c0_i32_2 = arith.constant 0 : i32
    return %0, %c0_i32_0, %c0_i32_1 : i32, i32, i32
  }
  func.func @transform_2(%arg0: i32) -> (i32, i32) {
    %c0_i32 = arith.constant 0 : i32
    %c0_i32_0 = arith.constant 0 : i32
    %c0_i32_1 = arith.constant 0 : i32
    return %c0_i32, %c0_i32_0 : i32, i32
  }
  func.func @transform_3(%arg0: i32) -> (i32, i32) {
    %c0_i32 = arith.constant 0 : i32
    %c0_i32_0 = arith.constant 0 : i32
    %c0_i32_1 = arith.constant 0 : i32
    return %c0_i32, %c0_i32_0 : i32, i32
  }
  func.func @transform_4(%arg0: i32) -> (i32, i32, i32) {
    %c0_i32 = arith.constant 0 : i32
    %c0_i32_0 = arith.constant 0 : i32
    %c0_i32_1 = arith.constant 0 : i32
    return %arg0, %c0_i32, %c0_i32_0 : i32, i32, i32
  }
  func.func @transform_5(%arg0: i32) -> (i32, i32, i32) {
    %c0_i32 = arith.constant 0 : i32
    %0 = arith.subi %c0_i32, %arg0 : i32
    %c0_i32_0 = arith.constant 0 : i32
    %c0_i32_1 = arith.constant 0 : i32
    %c0_i32_2 = arith.constant 0 : i32
    return %0, %c0_i32_0, %c0_i32_1 : i32, i32, i32
  }
}

</mosaic_0001>

<llo_original>
// kernel: tpu_custom_call.1
$region0: #{tpu_custom_call.1}
  #allocation0 [shape = 'u32[]', space=smem, size = 0x4, offset = 0x4, fixed_abs, tag = 'smem constant byte address 0x4 - core index']
  #allocation1 [shape = 'u32[144,128]{1,0:T(1,128)}', space=vmem, size = 0x12000, scoped, tag = 'internal scratch']
  #allocation2 [shape = 'f32[2,64]{1,0:T(2,128)}', space=vmem, size = 0x400, scoped, tag = 'scratch operand']
  #allocation3 [shape = 'f32[2,64]{1,0:T(2,128)}', space=vmem, size = 0x400, scoped, tag = 'scratch operand']
  %s0 = inlined_call_operand.hbm [shape: bf16[8,2,32], index: 0, kind: input, shape index: {}]
  %s1 = inlined_call_operand.hbm [shape: bf16[8,2,32], index: 1, kind: input, shape index: {}]
  %s2 = inlined_call_operand.hbm [shape: bf16[128,256], index: 2, kind: input, shape index: {}]
  %s3 = inlined_call_operand.vmem [shape: f32[1,256], index: 3, kind: input, shape index: {}]
  %s4 = inlined_call_operand.hbm [shape: f32[8,2,32], index: 4, kind: output, shape index: {0}]
  %s5 = inlined_call_operand.hbm [shape: f32[8,2,32], index: 5, kind: output, shape index: {1}]
  %6 = xla_tuple %s4, %s5
  %s7 = sld [smem:[#allocation0]]
  $region50: #{tpu_custom_call.1} parent=0
    _
  %s9 = ssub.s32 1, %s7
  %s10 = scalar_select 0, %s9, %s7
  $region1: #{tpu_custom_call.1} parent=0
    #allocation4 [shape = 'u8[4096]{0}', space=vmem, size = 0x1000, scoped, tag = 'input window, operand 0, single buffered']
    #allocation5 [shape = 's32[1]{0}', space=sflag, size = 0x4, scoped, tag = 'scoped memory for tpu_custom_call.1']
    #allocation6 [shape = 's32[1]{0}', space=sflag, size = 0x4, scoped, tag = 'scoped memory for tpu_custom_call.1']
    #allocation7 [shape = 'u8[4096]{0}', space=vmem, size = 0x1000, scoped, tag = 'input window, operand 1, single buffered']
    #allocation8 [shape = 's32[1]{0}', space=sflag, size = 0x4, scoped, tag = 'scoped memory for tpu_custom_call.1']
    #allocation9 [shape = 'u8[65536]{0}', space=vmem, size = 0x10000, scoped, tag = 'input window, operand 2, single buffered']
    #allocation10 [shape = 'u8[8192]{0}', space=vmem, size = 0x2000, scoped, tag = 'output window, operand 0, single buffered']
    #allocation11 [shape = 'u8[8192]{0}', space=vmem, size = 0x2000, scoped, tag = 'output window, operand 1, single buffered']
    #allocation12 [shape = 's32[1]{0}', space=sflag, size = 0x4, scoped, tag = 'scoped memory for tpu_custom_call.1']
    %11 = vsyncpa [#allocation5], 0
    %12 = vsyncpa [#allocation8], 0
    %13 = vsyncpa [#allocation6], 0
    %14 = vsyncpa [#allocation12], 0
    // Predicated region
    $region2: #{tpu_custom_call.1} parent=1 // pred_check
      _
    $region3: #{tpu_custom_call.1} parent=1 // pred_check_branch
      %16 = sbr.rel (0) target = $region5
    $region4: #{tpu_custom_call.1} parent=1 // pred_region
      %s18 = ssub.s32 128, 128
      %19 = vsyncadd [#allocation5], %s18
      %s20 = sshll.u32 [#allocation4], 4
      %s21 = int_to_ptr.vmem [resolvable:$true] %s20
      %26 = dma.hbm_to_vmem [thread:$0]  %s0, 128, %s21, [#allocation5], 16, 16, 1
    $region5: #{tpu_custom_call.1} parent=1 // pred_fallthru
      _
    // Predicated region
    $region6: #{tpu_custom_call.1} parent=1 // pred_check
      _
    $region7: #{tpu_custom_call.1} parent=1 // pred_check_branch
      %28 = sbr.rel (0) target = $region9
    $region8: #{tpu_custom_call.1} parent=1 // pred_region
      %s29 = ssub.s32 0, 0
      %s30 = smul.u32 8, %s29
      %s32 = ssub.s32 128, 128
      %33 = vsyncadd [#allocation8], %s32
      %s34 = smul.addr %s30, 16
      %s35 = scalar_lea.hbm %s1, %s34
      %s36 = sshll.u32 [#allocation7], 4
      %s37 = int_to_ptr.vmem [resolvable:$true] %s36
      %42 = dma.hbm_to_vmem [thread:$0]  %s35, 128, %s37, [#allocation8], 16, 16, 1
    $region9: #{tpu_custom_call.1} parent=1 // pred_fallthru
      _
    // Predicated region
    $region10: #{tpu_custom_call.1} parent=1 // pred_check
      _
    $region11: #{tpu_custom_call.1} parent=1 // pred_check_branch
      %44 = sbr.rel (0) target = $region13
    $region12: #{tpu_custom_call.1} parent=1 // pred_region
      %s46 = ssub.s32 2048, 2048
      %47 = vsyncadd [#allocation8], %s46
      %s48 = sshll.u32 [#allocation9], 4
      %s49 = int_to_ptr.vmem [resolvable:$true] %s48
      %54 = dma.hbm_to_vmem [thread:$0]  %s2, 2048, %s49, [#allocation8], 128, 128, 8
    $region13: #{tpu_custom_call.1} parent=1 // pred_fallthru
      _
    // Predicated region
    $region14: #{tpu_custom_call.1} parent=1 // pred_check
      _
    $region15: #{tpu_custom_call.1} parent=1 // pred_check_branch
      %56 = sbr.rel (0) target = $region17
    $region16: #{tpu_custom_call.1} parent=1 // pred_region
      _
    $region17: #{tpu_custom_call.1} parent=1 // pred_fallthru
      _
    // Predicated region
    $region18: #{tpu_custom_call.1} parent=1 // pred_check
      _
    $region19: #{tpu_custom_call.1} parent=1 // pred_check_branch
      %58 = sbr.rel (0) target = $region21
    $region20: #{tpu_custom_call.1} parent=1 // pred_region
      %59 = dma.done [#allocation5], 128
    $region21: #{tpu_custom_call.1} parent=1 // pred_fallthru
      _
    // Predicated region
    $region22: #{tpu_custom_call.1} parent=1 // pred_check
      _
    $region23: #{tpu_custom_call.1} parent=1 // pred_check_branch
      %61 = sbr.rel (0) target = $region25
    $region24: #{tpu_custom_call.1} parent=1 // pred_region
      %62 = dma.done [#allocation8], 128
    $region25: #{tpu_custom_call.1} parent=1 // pred_fallthru
      _
    // Predicated region
    $region26: #{tpu_custom_call.1} parent=1 // pred_check
      _
    $region27: #{tpu_custom_call.1} parent=1 // pred_check_branch
      %64 = sbr.rel (0) target = $region29
    $region28: #{tpu_custom_call.1} parent=1 // pred_region
      %65 = dma.done [#allocation8], 2048
    $region29: #{tpu_custom_call.1} parent=1 // pred_fallthru
      _
    %s66 = ssub.s32 0, 0
    %s67 = smul.u32 8, %s66
    %s68 = ssub.s32 0, 0
    %s69 = smul.u32 8, %s68
    %p71 = scmp.eq.s32.totalorder 0, 0
    // Predicated region
    $region30: #{tpu_custom_call.1} parent=1 // pred_check
      %p72 = pneg %p71
    $region31: #{tpu_custom_call.1} parent=1 // pred_check_branch
      %74 = sbr.rel (%p72) target = $region33
    $region32: #{tpu_custom_call.1} parent=1 // pred_region
      %vm75 = vcmask 517120
      %76 = vst.msk [vmem:[#allocation2] sm:$0x3] %vm75, 0.0
      %77 = vst.msk [vmem:[#allocation3] sm:$0x3] %vm75, 0.0
    $region33: #{tpu_custom_call.1} parent=1 // pred_fallthru
      _
    %v78 = vld [vmem:[#allocation9] sm:$0xff]
    %v79 = vld [vmem:[#allocation9 + $0x8] sm:$0xff]
    %v80 = vld [vmem:[#allocation9 + $0x10] sm:$0xff]
    %v81 = vld [vmem:[#allocation9 + $0x18] sm:$0xff]
    %v82 = vld [vmem:[#allocation9 + $0x20] sm:$0xff]
    %v83 = vld [vmem:[#allocation9 + $0x28] sm:$0xff]
    %v84 = vld [vmem:[#allocation9 + $0x30] sm:$0xff]
    %v85 = vld [vmem:[#allocation9 + $0x38] sm:$0xff]
    %v86 = vld [vmem:[#allocation9 + $0x40] sm:$0xff]
    %v87 = vld [vmem:[#allocation9 + $0x48] sm:$0xff]
    %v88 = vld [vmem:[#allocation9 + $0x50] sm:$0xff]
    %v89 = vld [vmem:[#allocation9 + $0x58] sm:$0xff]
    %v90 = vld [vmem:[#allocation9 + $0x60] sm:$0xff]
    %v91 = vld [vmem:[#allocation9 + $0x68] sm:$0xff]
    %v92 = vld [vmem:[#allocation9 + $0x70] sm:$0xff]
    %v93 = vld [vmem:[#allocation9 + $0x78] sm:$0xff]
    %v94 = vld [vmem:[%s3] sm:$0x3]
    %v96 = vlaneseq
    %v97 = vshrl.u32 %v96, 7
    %v98 = vsub.s32 0, %v97
    %v99 = vrot.slane %v94, %v98
    %v100 = vlaneseq
    %v101 = vshrl.u32 %v100, 7
    %v102 = vsub.s32 1, %v101
    %v103 = vrot.slane %v94, %v102
    %v106 = vld [vmem:[#allocation2] sm:$0x3]
    %v107 = vld [vmem:[#allocation3] sm:$0x3]
    %v108 = vld [vmem:[#allocation4] sm:$0x1]
    %s109 = scalar_lea.vmem [#allocation7], 7
    %v110 = vld [vmem:[%s109] sm:$0x1]
    %v111 = vpack.c.bf16 %v106, %v106
    %v114 = vunpack.c.l.s4 1966171168
    %v115 = vunpack.c.0.s8 %v114
    %v116 = vlaneseq
    %v117 = vshrl.u32 %v116, 7
    %v118 = vsub.s32 %v115, %v117
    %v119 = vrot.slane %v110, %v118
    %v121 = vunpack.c.l.s4 1966171168
    %v122 = vunpack.c.0.s8 %v121
    %v123 = vlaneseq
    %v124 = vshrl.u32 %v123, 7
    %v125 = vsub.s32 %v122, %v124
    %v126 = vrot.slane %v119, %v125
    %127 = vrot.lane.b32.xlu0 %v126, 32
    %v128 = vpop.permute.xlu0 %127
    %130 = vrot.lane.b32.xlu0 %v111, 64
    %v131 = vpop.permute.xlu0 %130
    %vm132 = vcmask 261120
    %v135 = vsel %vm132, %v108, %v128
    %vm136 = vcmask 523264
    %v138 = vsel %vm136, %v135, %v131
    %v156 = vunpack.c.l.b16 %v78
    %v157 = vunpack.c.h.b16 %v78
    %v158 = vunpack.c.l.b16 %v79
    %v159 = vunpack.c.h.b16 %v79
    %v160 = vunpack.c.l.b16 %v80
    %v161 = vunpack.c.h.b16 %v80
    %v162 = vunpack.c.l.b16 %v81
    %v163 = vunpack.c.h.b16 %v81
    %v164 = vunpack.c.l.b16 %v82
    %v165 = vunpack.c.h.b16 %v82
    %v166 = vunpack.c.l.b16 %v83
    %v167 = vunpack.c.h.b16 %v83
    %v168 = vunpack.c.l.b16 %v84
    %v169 = vunpack.c.h.b16 %v84
    %v170 = vunpack.c.l.b16 %v85
    %v171 = vunpack.c.h.b16 %v85
    %v172 = vunpack.c.l.b16 %v86
    %v173 = vunpack.c.h.b16 %v86
    %v174 = vunpack.c.l.b16 %v87
    %v175 = vunpack.c.h.b16 %v87
    %v176 = vunpack.c.l.b16 %v88
    %v177 = vunpack.c.h.b16 %v88
    %v178 = vunpack.c.l.b16 %v89
    %v179 = vunpack.c.h.b16 %v89
    %v180 = vunpack.c.l.b16 %v90
    %v181 = vunpack.c.h.b16 %v90
    %v182 = vunpack.c.l.b16 %v91
    %v183 = vunpack.c.h.b16 %v91
    %v184 = vunpack.c.l.b16 %v92
    %v185 = vunpack.c.h.b16 %v92
    %v186 = vunpack.c.l.b16 %v93
    %v187 = vunpack.c.h.b16 %v93
    %v188 = vpack.c.b16 %v158, %v156
    %v189 = vpack.c.b16 %v159, %v157
    %v190 = vpack.c.b16 %v162, %v160
    %v191 = vpack.c.b16 %v163, %v161
    %v192 = vpack.c.b16 %v166, %v164
    %v193 = vpack.c.b16 %v167, %v165
    %v194 = vpack.c.b16 %v170, %v168
    %v195 = vpack.c.b16 %v171, %v169
    %v196 = vpack.c.b16 %v174, %v172
    %v197 = vpack.c.b16 %v175, %v173
    %v198 = vpack.c.b16 %v178, %v176
    %v199 = vpack.c.b16 %v179, %v177
    %v200 = vpack.c.b16 %v182, %v180
    %v201 = vpack.c.b16 %v183, %v181
    %v202 = vpack.c.b16 %v186, %v184
    %v203 = vpack.c.b16 %v187, %v185
    %220 = vmatprep.subr.bf16.mxu0 %v203
    %221 = vmatpush1.bf16.msra.mxu0 %v202
    %222 = vmatprep.subr.bf16.mxu0 %v201
    %223 = vmatpush1.bf16.msra.mxu0 %v200
    %224 = vmatprep.subr.bf16.mxu0 %v199
    %225 = vmatpush1.bf16.msra.mxu0 %v198
    %226 = vmatprep.subr.bf16.mxu0 %v197
    %227 = vmatpush1.bf16.msra.mxu0 %v196
    %228 = vmatprep.subr.bf16.mxu0 %v195
    %229 = vmatpush1.bf16.msra.mxu0 %v194
    %230 = vmatprep.subr.bf16.mxu0 %v193
    %231 = vmatpush1.bf16.msra.mxu0 %v192
    %232 = vmatprep.subr.bf16.mxu0 %v191
    %233 = vmatpush1.bf16.msra.mxu0 %v190
    %234 = vmatprep.subr.bf16.mxu0 %v189
    %235 = vmatpush1.bf16.msra.mxu0 %v188
    %236 = vmatprep.subr.bf16.mxu0 0
    %237 = vmatpush2.bf16.msra.mxu0 0
    %238 = vmatprep.subr.bf16.mxu0 0
    %239 = vmatpush2.bf16.msra.mxu0 0
    %240 = vmatprep.subr.bf16.mxu0 0
    %241 = vmatpush2.bf16.msra.mxu0 0
    %242 = vmatprep.subr.bf16.mxu0 0
    %243 = vmatpush2.bf16.msra.mxu0 0
    %244 = vmatprep.subr.bf16.mxu0 0
    %245 = vmatpush2.bf16.msra.mxu0 0
    %246 = vmatprep.subr.bf16.mxu0 0
    %247 = vmatpush2.bf16.msra.mxu0 0
    %248 = vmatprep.subr.bf16.mxu0 0
    %249 = vmatpush2.bf16.msra.mxu0 0
    %250 = vmatprep.subr.bf16.mxu0 0
    %251 = vmatpush2.bf16.msra.mxu0 0
    %252 = vmatprep.mubr.bf16.mxu0 0
    %253 = vmatmul.mubr.bf16.gmra.mxu0 %v138
    %v254 = vpop.f32.mrf.mxu0
    %v255 = vadd.f32 %v99, %v254
    %v256 = vpop.f32.mrf.mxu0
    %v257 = vadd.f32 %v103, %v256
    %v258 = vpop.f32.mrf.mxu0
    %v259 = vpop.f32.mrf.mxu0
    %260 = vdwg.mxu0
    %v261 = vxor.u32 %v255, 2147483648
    %v262 = vmul.f32 %v261, 1.442695
    %v263 = vpow.pop %v262
    %v264 = vadd.f32 %v263, 1.0
    %v265 = vrcp.pop %v264
    %v266 = vmul.f32 1.0, %v265
    %v267 = vtanh.pop %v257
    %v268 = vxor.u32 %v257, 2147483648
    %v269 = vmul.f32 %v268, 1.442695
    %v270 = vpow.pop %v269
    %v271 = vadd.f32 %v270, 1.0
    %v272 = vrcp.pop %v271
    %v273 = vmul.f32 1.0, %v272
    %275 = vrot.lane.b32.xlu0 %v107, 64
    %v276 = vpop.permute.xlu0 %275
    %v278 = vmul.f32 %v266, %v276
    %v279 = vmul.f32 %v266, %v267
    %281 = vrot.lane.b32.xlu0 %v279, 64
    %v282 = vpop.permute.xlu0 %281
    %v284 = vadd.f32 %v278, %v282
    %v285 = vtanh.pop %v284
    %v286 = vmul.f32 %v273, %v285
    %288 = vrot.lane.b32.xlu0 %v286, 64
    %v289 = vpop.permute.xlu0 %288
    %vm291 = vcmask 254976
    %292 = vst.msk [vmem:[#allocation10] sm:$0x3] %vm291, %v289
    %293 = vrot.lane.b32.xlu0 %v286, 32
    %v294 = vpop.permute.xlu0 %293
    %s296 = scalar_lea.vmem [#allocation11], 14
    %297 = vst.msk [vmem:[%s296] sm:$0x3] %vm291, %v294
    %s298 = scalar_lea.vmem [#allocation4], 1
    %v299 = vld [vmem:[%s298] sm:$0x1]
    %s300 = scalar_lea.vmem [#allocation7], 6
    %v301 = vld [vmem:[%s300] sm:$0x1]
    %v302 = vpack.c.bf16 %v286, %v286
    %v305 = vunpack.c.l.s4 1966171168
    %v306 = vunpack.c.0.s8 %v305
    %v307 = vlaneseq
    %v308 = vshrl.u32 %v307, 7
    %v309 = vsub.s32 %v306, %v308
    %v310 = vrot.slane %v301, %v309
    %v312 = vunpack.c.l.s4 1966171168
    %v313 = vunpack.c.0.s8 %v312
    %v314 = vlaneseq
    %v315 = vshrl.u32 %v314, 7
    %v316 = vsub.s32 %v313, %v315
    %v317 = vrot.slane %v310, %v316
    %318 = vrot.lane.b32.xlu0 %v317, 32
    %v319 = vpop.permute.xlu0 %318
    %v322 = vsel %vm132, %v299, %v319
    %v324 = vsel %vm136, %v322, %v302
    %326 = vmatprep.subr.bf16.mxu0 %v203
    %327 = vmatpush1.bf16.msra.mxu0 %v202
    %328 = vmatprep.subr.bf16.mxu0 %v201
    %329 = vmatpush1.bf16.msra.mxu0 %v200
    %330 = vmatprep.subr.bf16.mxu0 %v199
    %331 = vmatpush1.bf16.msra.mxu0 %v198
    %332 = vmatprep.subr.bf16.mxu0 %v197
    %333 = vmatpush1.bf16.msra.mxu0 %v196
    %334 = vmatprep.subr.bf16.mxu0 %v195
    %335 = vmatpush1.bf16.msra.mxu0 %v194
    %336 = vmatprep.subr.bf16.mxu0 %v193
    %337 = vmatpush1.bf16.msra.mxu0 %v192
    %338 = vmatprep.subr.bf16.mxu0 %v191
    %339 = vmatpush1.bf16.msra.mxu0 %v190
    %340 = vmatprep.subr.bf16.mxu0 %v189
    %341 = vmatpush1.bf16.msra.mxu0 %v188
    %342 = vmatprep.subr.bf16.mxu0 0
    %343 = vmatpush2.bf16.msra.mxu0 0
    %344 = vmatprep.subr.bf16.mxu0 0
    %345 = vmatpush2.bf16.msra.mxu0 0
    %346 = vmatprep.subr.bf16.mxu0 0
    %347 = vmatpush2.bf16.msra.mxu0 0
    %348 = vmatprep.subr.bf16.mxu0 0
    %349 = vmatpush2.bf16.msra.mxu0 0
    %350 = vmatprep.subr.bf16.mxu0 0
    %351 = vmatpush2.bf16.msra.mxu0 0
    %352 = vmatprep.subr.bf16.mxu0 0
    %353 = vmatpush2.bf16.msra.mxu0 0
    %354 = vmatprep.subr.bf16.mxu0 0
    %355 = vmatpush2.bf16.msra.mxu0 0
    %356 = vmatprep.subr.bf16.mxu0 0
    %357 = vmatpush2.bf16.msra.mxu0 0
    %358 = vmatprep.mubr.bf16.mxu0 0
    %359 = vmatmul.mubr.bf16.gmra.mxu0 %v324
    %v360 = vpop.f32.mrf.mxu0
    %v361 = vadd.f32 %v99, %v360
    %v362 = vpop.f32.mrf.mxu0
    %v363 = vadd.f32 %v103, %v362
    %v364 = vpop.f32.mrf.mxu0
    %v365 = vpop.f32.mrf.mxu0
    %366 = vdwg.mxu0
    %v367 = vxor.u32 %v361, 2147483648
    %v368 = vmul.f32 %v367, 1.442695
    %v369 = vpow.pop %v368
    %v370 = vadd.f32 %v369, 1.0
    %v371 = vrcp.pop %v370
    %v372 = vmul.f32 1.0, %v371
    %v373 = vtanh.pop %v363
    %v374 = vxor.u32 %v363, 2147483648
    %v375 = vmul.f32 %v374, 1.442695
    %v376 = vpow.pop %v375
    %v377 = vadd.f32 %v376, 1.0
    %v378 = vrcp.pop %v377
    %v379 = vmul.f32 1.0, %v378
    %v380 = vmul.f32 %v372, %v284
    %v381 = vmul.f32 %v372, %v373
    %383 = vrot.lane.b32.xlu0 %v381, 64
    %v384 = vpop.permute.xlu0 %383
    %v386 = vadd.f32 %v380, %v384
    %v387 = vtanh.pop %v386
    %v388 = vmul.f32 %v379, %v387
    %390 = vrot.lane.b32.xlu0 %v388, 64
    %v391 = vpop.permute.xlu0 %390
    %s393 = scalar_lea.vmem [#allocation10], 2
    %394 = vst.msk [vmem:[%s393] sm:$0x3] %vm291, %v391
    %395 = vrot.lane.b32.xlu0 %v388, 32
    %v396 = vpop.permute.xlu0 %395
    %s398 = scalar_lea.vmem [#allocation11], 12
    %399 = vst.msk [vmem:[%s398] sm:$0x3] %vm291, %v396
    %s400 = scalar_lea.vmem [#allocation4], 2
    %v401 = vld [vmem:[%s400] sm:$0x1]
    %s402 = scalar_lea.vmem [#allocation7], 5
    %v403 = vld [vmem:[%s402] sm:$0x1]
    %v404 = vpack.c.bf16 %v388, %v388
    %v407 = vunpack.c.l.s4 1966171168
    %v408 = vunpack.c.0.s8 %v407
    %v409 = vlaneseq
    %v410 = vshrl.u32 %v409, 7
    %v411 = vsub.s32 %v408, %v410
    %v412 = vrot.slane %v403, %v411
    %v414 = vunpack.c.l.s4 1966171168
    %v415 = vunpack.c.0.s8 %v414
    %v416 = vlaneseq
    %v417 = vshrl.u32 %v416, 7
    %v418 = vsub.s32 %v415, %v417
    %v419 = vrot.slane %v412, %v418
    %420 = vrot.lane.b32.xlu0 %v419, 32
    %v421 = vpop.permute.xlu0 %420
    %v424 = vsel %vm132, %v401, %v421
    %v426 = vsel %vm136, %v424, %v404
    %428 = vmatprep.subr.bf16.mxu0 %v203
    %429 = vmatpush1.bf16.msra.mxu0 %v202
    %430 = vmatprep.subr.bf16.mxu0 %v201
    %431 = vmatpush1.bf16.msra.mxu0 %v200
    %432 = vmatprep.subr.bf16.mxu0 %v199
    %433 = vmatpush1.bf16.msra.mxu0 %v198
    %434 = vmatprep.subr.bf16.mxu0 %v197
    %435 = vmatpush1.bf16.msra.mxu0 %v196
    %436 = vmatprep.subr.bf16.mxu0 %v195
    %437 = vmatpush1.bf16.msra.mxu0 %v194
    %438 = vmatprep.subr.bf16.mxu0 %v193
    %439 = vmatpush1.bf16.msra.mxu0 %v192
    %440 = vmatprep.subr.bf16.mxu0 %v191
    %441 = vmatpush1.bf16.msra.mxu0 %v190
    %442 = vmatprep.subr.bf16.mxu0 %v189
    %443 = vmatpush1.bf16.msra.mxu0 %v188
    %444 = vmatprep.subr.bf16.mxu0 0
    %445 = vmatpush2.bf16.msra.mxu0 0
    %446 = vmatprep.subr.bf16.mxu0 0
    %447 = vmatpush2.bf16.msra.mxu0 0
    %448 = vmatprep.subr.bf16.mxu0 0
    %449 = vmatpush2.bf16.msra.mxu0 0
    %450 = vmatprep.subr.bf16.mxu0 0
    %451 = vmatpush2.bf16.msra.mxu0 0
    %452 = vmatprep.subr.bf16.mxu0 0
    %453 = vmatpush2.bf16.msra.mxu0 0
    %454 = vmatprep.subr.bf16.mxu0 0
    %455 = vmatpush2.bf16.msra.mxu0 0
    %456 = vmatprep.subr.bf16.mxu0 0
    %457 = vmatpush2.bf16.msra.mxu0 0
    %458 = vmatprep.subr.bf16.mxu0 0
    %459 = vmatpush2.bf16.msra.mxu0 0
    %460 = vmatprep.mubr.bf16.mxu0 0
    %461 = vmatmul.mubr.bf16.gmra.mxu0 %v426
    %v462 = vpop.f32.mrf.mxu0
    %v463 = vadd.f32 %v99, %v462
    %v464 = vpop.f32.mrf.mxu0
    %v465 = vadd.f32 %v103, %v464
    %v466 = vpop.f32.mrf.mxu0
    %v467 = vpop.f32.mrf.mxu0
    %468 = vdwg.mxu0
    %v469 = vxor.u32 %v463, 2147483648
    %v470 = vmul.f32 %v469, 1.442695
    %v471 = vpow.pop %v470
    %v472 = vadd.f32 %v471, 1.0
    %v473 = vrcp.pop %v472
    %v474 = vmul.f32 1.0, %v473
    %v475 = vtanh.pop %v465
    %v476 = vxor.u32 %v465, 2147483648
    %v477 = vmul.f32 %v476, 1.442695
    %v478 = vpow.pop %v477
    %v479 = vadd.f32 %v478, 1.0
    %v480 = vrcp.pop %v479
    %v481 = vmul.f32 1.0, %v480
    %v482 = vmul.f32 %v474, %v386
    %v483 = vmul.f32 %v474, %v475
    %485 = vrot.lane.b32.xlu0 %v483, 64
    %v486 = vpop.permute.xlu0 %485
    %v488 = vadd.f32 %v482, %v486
    %v489 = vtanh.pop %v488
    %v490 = vmul.f32 %v481, %v489
    %492 = vrot.lane.b32.xlu0 %v490, 64
    %v493 = vpop.permute.xlu0 %492
    %s495 = scalar_lea.vmem [#allocation10], 4
    %496 = vst.msk [vmem:[%s495] sm:$0x3] %vm291, %v493
    %497 = vrot.lane.b32.xlu0 %v490, 32
    %v498 = vpop.permute.xlu0 %497
    %s500 = scalar_lea.vmem [#allocation11], 10
    %501 = vst.msk [vmem:[%s500] sm:$0x3] %vm291, %v498
    %s502 = scalar_lea.vmem [#allocation4], 3
    %v503 = vld [vmem:[%s502] sm:$0x1]
    %s504 = scalar_lea.vmem [#allocation7], 4
    %v505 = vld [vmem:[%s504] sm:$0x1]
    %v506 = vpack.c.bf16 %v490, %v490
    %v509 = vunpack.c.l.s4 1966171168
    %v510 = vunpack.c.0.s8 %v509
    %v511 = vlaneseq
    %v512 = vshrl.u32 %v511, 7
    %v513 = vsub.s32 %v510, %v512
    %v514 = vrot.slane %v505, %v513
    %v516 = vunpack.c.l.s4 1966171168
    %v517 = vunpack.c.0.s8 %v516
    %v518 = vlaneseq
    %v519 = vshrl.u32 %v518, 7
    %v520 = vsub.s32 %v517, %v519
    %v521 = vrot.slane %v514, %v520
    %522 = vrot.lane.b32.xlu0 %v521, 32
    %v523 = vpop.permute.xlu0 %522
    %v526 = vsel %vm132, %v503, %v523
    %v528 = vsel %vm136, %v526, %v506
    %530 = vmatprep.subr.bf16.mxu0 %v203
    %531 = vmatpush1.bf16.msra.mxu0 %v202
    %532 = vmatprep.subr.bf16.mxu0 %v201
    %533 = vmatpush1.bf16.msra.mxu0 %v200
    %534 = vmatprep.subr.bf16.mxu0 %v199
    %535 = vmatpush1.bf16.msra.mxu0 %v198
    %536 = vmatprep.subr.bf16.mxu0 %v197
    %537 = vmatpush1.bf16.msra.mxu0 %v196
    %538 = vmatprep.subr.bf16.mxu0 %v195
    %539 = vmatpush1.bf16.msra.mxu0 %v194
    %540 = vmatprep.subr.bf16.mxu0 %v193
    %541 = vmatpush1.bf16.msra.mxu0 %v192
    %542 = vmatprep.subr.bf16.mxu0 %v191
    %543 = vmatpush1.bf16.msra.mxu0 %v190
    %544 = vmatprep.subr.bf16.mxu0 %v189
    %545 = vmatpush1.bf16.msra.mxu0 %v188
    %546 = vmatprep.subr.bf16.mxu0 0
    %547 = vmatpush2.bf16.msra.mxu0 0
    %548 = vmatprep.subr.bf16.mxu0 0
    %549 = vmatpush2.bf16.msra.mxu0 0
    %550 = vmatprep.subr.bf16.mxu0 0
    %551 = vmatpush2.bf16.msra.mxu0 0
    %552 = vmatprep.subr.bf16.mxu0 0
    %553 = vmatpush2.bf16.msra.mxu0 0
    %554 = vmatprep.subr.bf16.mxu0 0
    %555 = vmatpush2.bf16.msra.mxu0 0
    %556 = vmatprep.subr.bf16.mxu0 0
    %557 = vmatpush2.bf16.msra.mxu0 0
    %558 = vmatprep.subr.bf16.mxu0 0
    %559 = vmatpush2.bf16.msra.mxu0 0
    %560 = vmatprep.subr.bf16.mxu0 0
    %561 = vmatpush2.bf16.msra.mxu0 0
    %562 = vmatprep.mubr.bf16.mxu0 0
    %563 = vmatmul.mubr.bf16.gmra.mxu0 %v528
    %v564 = vpop.f32.mrf.mxu0
    %v565 = vadd.f32 %v99, %v564
    %v566 = vpop.f32.mrf.mxu0
    %v567 = vadd.f32 %v103, %v566
    %v568 = vpop.f32.mrf.mxu0
    %v569 = vpop.f32.mrf.mxu0
    %570 = vdwg.mxu0
    %v571 = vxor.u32 %v565, 2147483648
    %v572 = vmul.f32 %v571, 1.442695
    %v573 = vpow.pop %v572
    %v574 = vadd.f32 %v573, 1.0
    %v575 = vrcp.pop %v574
    %v576 = vmul.f32 1.0, %v575
    %v577 = vtanh.pop %v567
    %v578 = vxor.u32 %v567, 2147483648
    %v579 = vmul.f32 %v578, 1.442695
    %v580 = vpow.pop %v579
    %v581 = vadd.f32 %v580, 1.0
    %v582 = vrcp.pop %v581
    %v583 = vmul.f32 1.0, %v582
    %v584 = vmul.f32 %v576, %v488
    %v585 = vmul.f32 %v576, %v577
    %587 = vrot.lane.b32.xlu0 %v585, 64
    %v588 = vpop.permute.xlu0 %587
    %v590 = vadd.f32 %v584, %v588
    %v591 = vtanh.pop %v590
    %v592 = vmul.f32 %v583, %v591
    %594 = vrot.lane.b32.xlu0 %v592, 64
    %v595 = vpop.permute.xlu0 %594
    %s597 = scalar_lea.vmem [#allocation10], 6
    %598 = vst.msk [vmem:[%s597] sm:$0x3] %vm291, %v595
    %599 = vrot.lane.b32.xlu0 %v592, 32
    %v600 = vpop.permute.xlu0 %599
    %s602 = scalar_lea.vmem [#allocation11], 8
    %603 = vst.msk [vmem:[%s602] sm:$0x3] %vm291, %v600
    %s604 = scalar_lea.vmem [#allocation4], 4
    %v605 = vld [vmem:[%s604] sm:$0x1]
    %s606 = scalar_lea.vmem [#allocation7], 3
    %v607 = vld [vmem:[%s606] sm:$0x1]
    %v608 = vpack.c.bf16 %v592, %v592
    %v611 = vunpack.c.l.s4 1966171168
    %v612 = vunpack.c.0.s8 %v611
    %v613 = vlaneseq
    %v614 = vshrl.u32 %v613, 7
    %v615 = vsub.s32 %v612, %v614
    %v616 = vrot.slane %v607, %v615
    %v618 = vunpack.c.l.s4 1966171168
    %v619 = vunpack.c.0.s8 %v618
    %v620 = vlaneseq
    %v621 = vshrl.u32 %v620, 7
    %v622 = vsub.s32 %v619, %v621
    %v623 = vrot.slane %v616, %v622
    %624 = vrot.lane.b32.xlu0 %v623, 32
    %v625 = vpop.permute.xlu0 %624
    %v628 = vsel %vm132, %v605, %v625
    %v630 = vsel %vm136, %v628, %v608
    %632 = vmatprep.subr.bf16.mxu0 %v203
    %633 = vmatpush1.bf16.msra.mxu0 %v202
    %634 = vmatprep.subr.bf16.mxu0 %v201
    %635 = vmatpush1.bf16.msra.mxu0 %v200
    %636 = vmatprep.subr.bf16.mxu0 %v199
    %637 = vmatpush1.bf16.msra.mxu0 %v198
    %638 = vmatprep.subr.bf16.mxu0 %v197
    %639 = vmatpush1.bf16.msra.mxu0 %v196
    %640 = vmatprep.subr.bf16.mxu0 %v195
    %641 = vmatpush1.bf16.msra.mxu0 %v194
    %642 = vmatprep.subr.bf16.mxu0 %v193
    %643 = vmatpush1.bf16.msra.mxu0 %v192
    %644 = vmatprep.subr.bf16.mxu0 %v191
    %645 = vmatpush1.bf16.msra.mxu0 %v190
    %646 = vmatprep.subr.bf16.mxu0 %v189
    %647 = vmatpush1.bf16.msra.mxu0 %v188
    %648 = vmatprep.subr.bf16.mxu0 0
    %649 = vmatpush2.bf16.msra.mxu0 0
    %650 = vmatprep.subr.bf16.mxu0 0
    %651 = vmatpush2.bf16.msra.mxu0 0
    %652 = vmatprep.subr.bf16.mxu0 0
    %653 = vmatpush2.bf16.msra.mxu0 0
    %654 = vmatprep.subr.bf16.mxu0 0
    %655 = vmatpush2.bf16.msra.mxu0 0
    %656 = vmatprep.subr.bf16.mxu0 0
    %657 = vmatpush2.bf16.msra.mxu0 0
    %658 = vmatprep.subr.bf16.mxu0 0
    %659 = vmatpush2.bf16.msra.mxu0 0
    %660 = vmatprep.subr.bf16.mxu0 0
    %661 = vmatpush2.bf16.msra.mxu0 0
    %662 = vmatprep.subr.bf16.mxu0 0
    %663 = vmatpush2.bf16.msra.mxu0 0
    %664 = vmatprep.mubr.bf16.mxu0 0
    %665 = vmatmul.mubr.bf16.gmra.mxu0 %v630
    %v666 = vpop.f32.mrf.mxu0
    %v667 = vadd.f32 %v99, %v666
    %v668 = vpop.f32.mrf.mxu0
    %v669 = vadd.f32 %v103, %v668
    %v670 = vpop.f32.mrf.mxu0
    %v671 = vpop.f32.mrf.mxu0
    %672 = vdwg.mxu0
    %v673 = vxor.u32 %v667, 2147483648
    %v674 = vmul.f32 %v673, 1.442695
    %v675 = vpow.pop %v674
    %v676 = vadd.f32 %v675, 1.0
    %v677 = vrcp.pop %v676
    %v678 = vmul.f32 1.0, %v677
    %v679 = vtanh.pop %v669
    %v680 = vxor.u32 %v669, 2147483648
    %v681 = vmul.f32 %v680, 1.442695
    %v682 = vpow.pop %v681
    %v683 = vadd.f32 %v682, 1.0
    %v684 = vrcp.pop %v683
    %v685 = vmul.f32 1.0, %v684
    %v686 = vmul.f32 %v678, %v590
    %v687 = vmul.f32 %v678, %v679
    %689 = vrot.lane.b32.xlu0 %v687, 64
    %v690 = vpop.permute.xlu0 %689
    %v692 = vadd.f32 %v686, %v690
    %v693 = vtanh.pop %v692
    %v694 = vmul.f32 %v685, %v693
    %696 = vrot.lane.b32.xlu0 %v694, 64
    %v697 = vpop.permute.xlu0 %696
    %s699 = scalar_lea.vmem [#allocation10], 8
    %700 = vst.msk [vmem:[%s699] sm:$0x3] %vm291, %v697
    %701 = vrot.lane.b32.xlu0 %v694, 32
    %v702 = vpop.permute.xlu0 %701
    %s704 = scalar_lea.vmem [#allocation11], 6
    %705 = vst.msk [vmem:[%s704] sm:$0x3] %vm291, %v702
    %s706 = scalar_lea.vmem [#allocation4], 5
    %v707 = vld [vmem:[%s706] sm:$0x1]
    %s708 = scalar_lea.vmem [#allocation7], 2
    %v709 = vld [vmem:[%s708] sm:$0x1]
    %v710 = vpack.c.bf16 %v694, %v694
    %v713 = vunpack.c.l.s4 1966171168
    %v714 = vunpack.c.0.s8 %v713
    %v715 = vlaneseq
    %v716 = vshrl.u32 %v715, 7
    %v717 = vsub.s32 %v714, %v716
    %v718 = vrot.slane %v709, %v717
    %v720 = vunpack.c.l.s4 1966171168
    %v721 = vunpack.c.0.s8 %v720
    %v722 = vlaneseq
    %v723 = vshrl.u32 %v722, 7
    %v724 = vsub.s32 %v721, %v723
    %v725 = vrot.slane %v718, %v724
    %726 = vrot.lane.b32.xlu0 %v725, 32
    %v727 = vpop.permute.xlu0 %726
    %v730 = vsel %vm132, %v707, %v727
    %v732 = vsel %vm136, %v730, %v710
    %734 = vmatprep.subr.bf16.mxu0 %v203
    %735 = vmatpush1.bf16.msra.mxu0 %v202
    %736 = vmatprep.subr.bf16.mxu0 %v201
    %737 = vmatpush1.bf16.msra.mxu0 %v200
    %738 = vmatprep.subr.bf16.mxu0 %v199
    %739 = vmatpush1.bf16.msra.mxu0 %v198
    %740 = vmatprep.subr.bf16.mxu0 %v197
    %741 = vmatpush1.bf16.msra.mxu0 %v196
    %742 = vmatprep.subr.bf16.mxu0 %v195
    %743 = vmatpush1.bf16.msra.mxu0 %v194
    %744 = vmatprep.subr.bf16.mxu0 %v193
    %745 = vmatpush1.bf16.msra.mxu0 %v192
    %746 = vmatprep.subr.bf16.mxu0 %v191
    %747 = vmatpush1.bf16.msra.mxu0 %v190
    %748 = vmatprep.subr.bf16.mxu0 %v189
    %749 = vmatpush1.bf16.msra.mxu0 %v188
    %750 = vmatprep.subr.bf16.mxu0 0
    %751 = vmatpush2.bf16.msra.mxu0 0
    %752 = vmatprep.subr.bf16.mxu0 0
    %753 = vmatpush2.bf16.msra.mxu0 0
    %754 = vmatprep.subr.bf16.mxu0 0
    %755 = vmatpush2.bf16.msra.mxu0 0
    %756 = vmatprep.subr.bf16.mxu0 0
    %757 = vmatpush2.bf16.msra.mxu0 0
    %758 = vmatprep.subr.bf16.mxu0 0
    %759 = vmatpush2.bf16.msra.mxu0 0
    %760 = vmatprep.subr.bf16.mxu0 0
    %761 = vmatpush2.bf16.msra.mxu0 0
    %762 = vmatprep.subr.bf16.mxu0 0
    %763 = vmatpush2.bf16.msra.mxu0 0
    %764 = vmatprep.subr.bf16.mxu0 0
    %765 = vmatpush2.bf16.msra.mxu0 0
    %766 = vmatprep.mubr.bf16.mxu0 0
    %767 = vmatmul.mubr.bf16.gmra.mxu0 %v732
    %v768 = vpop.f32.mrf.mxu0
    %v769 = vadd.f32 %v99, %v768
    %v770 = vpop.f32.mrf.mxu0
    %v771 = vadd.f32 %v103, %v770
    %v772 = vpop.f32.mrf.mxu0
    %v773 = vpop.f32.mrf.mxu0
    %774 = vdwg.mxu0
    %v775 = vxor.u32 %v769, 2147483648
    %v776 = vmul.f32 %v775, 1.442695
    %v777 = vpow.pop %v776
    %v778 = vadd.f32 %v777, 1.0
    %v779 = vrcp.pop %v778
    %v780 = vmul.f32 1.0, %v779
    %v781 = vtanh.pop %v771
    %v782 = vxor.u32 %v771, 2147483648
    %v783 = vmul.f32 %v782, 1.442695
    %v784 = vpow.pop %v783
    %v785 = vadd.f32 %v784, 1.0
    %v786 = vrcp.pop %v785
    %v787 = vmul.f32 1.0, %v786
    %v788 = vmul.f32 %v780, %v692
    %v789 = vmul.f32 %v780, %v781
    %791 = vrot.lane.b32.xlu0 %v789, 64
    %v792 = vpop.permute.xlu0 %791
    %v794 = vadd.f32 %v788, %v792
    %v795 = vtanh.pop %v794
    %v796 = vmul.f32 %v787, %v795
    %798 = vrot.lane.b32.xlu0 %v796, 64
    %v799 = vpop.permute.xlu0 %798
    %s801 = scalar_lea.vmem [#allocation10], 10
    %802 = vst.msk [vmem:[%s801] sm:$0x3] %vm291, %v799
    %803 = vrot.lane.b32.xlu0 %v796, 32
    %v804 = vpop.permute.xlu0 %803
    %s806 = scalar_lea.vmem [#allocation11], 4
    %807 = vst.msk [vmem:[%s806] sm:$0x3] %vm291, %v804
    %s808 = scalar_lea.vmem [#allocation4], 6
    %v809 = vld [vmem:[%s808] sm:$0x1]
    %s810 = scalar_lea.vmem [#allocation7], 1
    %v811 = vld [vmem:[%s810] sm:$0x1]
    %v812 = vpack.c.bf16 %v796, %v796
    %v815 = vunpack.c.l.s4 1966171168
    %v816 = vunpack.c.0.s8 %v815
    %v817 = vlaneseq
    %v818 = vshrl.u32 %v817, 7
    %v819 = vsub.s32 %v816, %v818
    %v820 = vrot.slane %v811, %v819
    %v822 = vunpack.c.l.s4 1966171168
    %v823 = vunpack.c.0.s8 %v822
    %v824 = vlaneseq
    %v825 = vshrl.u32 %v824, 7
    %v826 = vsub.s32 %v823, %v825
    %v827 = vrot.slane %v820, %v826
    %828 = vrot.lane.b32.xlu0 %v827, 32
    %v829 = vpop.permute.xlu0 %828
    %v832 = vsel %vm132, %v809, %v829
    %v834 = vsel %vm136, %v832, %v812
    %836 = vmatprep.subr.bf16.mxu0 %v203
    %837 = vmatpush1.bf16.msra.mxu0 %v202
    %838 = vmatprep.subr.bf16.mxu0 %v201
    %839 = vmatpush1.bf16.msra.mxu0 %v200
    %840 = vmatprep.subr.bf16.mxu0 %v199
    %841 = vmatpush1.bf16.msra.mxu0 %v198
    %842 = vmatprep.subr.bf16.mxu0 %v197
    %843 = vmatpush1.bf16.msra.mxu0 %v196
    %844 = vmatprep.subr.bf16.mxu0 %v195
    %845 = vmatpush1.bf16.msra.mxu0 %v194
    %846 = vmatprep.subr.bf16.mxu0 %v193
    %847 = vmatpush1.bf16.msra.mxu0 %v192
    %848 = vmatprep.subr.bf16.mxu0 %v191
    %849 = vmatpush1.bf16.msra.mxu0 %v190
    %850 = vmatprep.subr.bf16.mxu0 %v189
    %851 = vmatpush1.bf16.msra.mxu0 %v188
    %852 = vmatprep.subr.bf16.mxu0 0
    %853 = vmatpush2.bf16.msra.mxu0 0
    %854 = vmatprep.subr.bf16.mxu0 0
    %855 = vmatpush2.bf16.msra.mxu0 0
    %856 = vmatprep.subr.bf16.mxu0 0
    %857 = vmatpush2.bf16.msra.mxu0 0
    %858 = vmatprep.subr.bf16.mxu0 0
    %859 = vmatpush2.bf16.msra.mxu0 0
    %860 = vmatprep.subr.bf16.mxu0 0
    %861 = vmatpush2.bf16.msra.mxu0 0
    %862 = vmatprep.subr.bf16.mxu0 0
    %863 = vmatpush2.bf16.msra.mxu0 0
    %864 = vmatprep.subr.bf16.mxu0 0
    %865 = vmatpush2.bf16.msra.mxu0 0
    %866 = vmatprep.subr.bf16.mxu0 0
    %867 = vmatpush2.bf16.msra.mxu0 0
    %868 = vmatprep.mubr.bf16.mxu0 0
    %869 = vmatmul.mubr.bf16.gmra.mxu0 %v834
    %v870 = vpop.f32.mrf.mxu0
    %v871 = vadd.f32 %v99, %v870
    %v872 = vpop.f32.mrf.mxu0
    %v873 = vadd.f32 %v103, %v872
    %v874 = vpop.f32.mrf.mxu0
    %v875 = vpop.f32.mrf.mxu0
    %876 = vdwg.mxu0
    %v877 = vxor.u32 %v871, 2147483648
    %v878 = vmul.f32 %v877, 1.442695
    %v879 = vpow.pop %v878
    %v880 = vadd.f32 %v879, 1.0
    %v881 = vrcp.pop %v880
    %v882 = vmul.f32 1.0, %v881
    %v883 = vtanh.pop %v873
    %v884 = vxor.u32 %v873, 2147483648
    %v885 = vmul.f32 %v884, 1.442695
    %v886 = vpow.pop %v885
    %v887 = vadd.f32 %v886, 1.0
    %v888 = vrcp.pop %v887
    %v889 = vmul.f32 1.0, %v888
    %v890 = vmul.f32 %v882, %v794
    %v891 = vmul.f32 %v882, %v883
    %893 = vrot.lane.b32.xlu0 %v891, 64
    %v894 = vpop.permute.xlu0 %893
    %v896 = vadd.f32 %v890, %v894
    %v897 = vtanh.pop %v896
    %v898 = vmul.f32 %v889, %v897
    %900 = vrot.lane.b32.xlu0 %v898, 64
    %v901 = vpop.permute.xlu0 %900
    %s903 = scalar_lea.vmem [#allocation10], 12
    %904 = vst.msk [vmem:[%s903] sm:$0x3] %vm291, %v901
    %905 = vrot.lane.b32.xlu0 %v898, 32
    %v906 = vpop.permute.xlu0 %905
    %s908 = scalar_lea.vmem [#allocation11], 2
    %909 = vst.msk [vmem:[%s908] sm:$0x3] %vm291, %v906
    %s910 = scalar_lea.vmem [#allocation4], 7
    %v911 = vld [vmem:[%s910] sm:$0x1]
    %v912 = vld [vmem:[#allocation7] sm:$0x1]
    %v913 = vpack.c.bf16 %v898, %v898
    %v916 = vunpack.c.l.s4 1966171168
    %v917 = vunpack.c.0.s8 %v916
    %v918 = vlaneseq
    %v919 = vshrl.u32 %v918, 7
    %v920 = vsub.s32 %v917, %v919
    %v921 = vrot.slane %v912, %v920
    %v923 = vunpack.c.l.s4 1966171168
    %v924 = vunpack.c.0.s8 %v923
    %v925 = vlaneseq
    %v926 = vshrl.u32 %v925, 7
    %v927 = vsub.s32 %v924, %v926
    %v928 = vrot.slane %v921, %v927
    %929 = vrot.lane.b32.xlu0 %v928, 32
    %v930 = vpop.permute.xlu0 %929
    %v933 = vsel %vm132, %v911, %v930
    %v935 = vsel %vm136, %v933, %v913
    %937 = vmatprep.subr.bf16.mxu0 %v203
    %938 = vmatpush1.bf16.msra.mxu0 %v202
    %939 = vmatprep.subr.bf16.mxu0 %v201
    %940 = vmatpush1.bf16.msra.mxu0 %v200
    %941 = vmatprep.subr.bf16.mxu0 %v199
    %942 = vmatpush1.bf16.msra.mxu0 %v198
    %943 = vmatprep.subr.bf16.mxu0 %v197
    %944 = vmatpush1.bf16.msra.mxu0 %v196
    %945 = vmatprep.subr.bf16.mxu0 %v195
    %946 = vmatpush1.bf16.msra.mxu0 %v194
    %947 = vmatprep.subr.bf16.mxu0 %v193
    %948 = vmatpush1.bf16.msra.mxu0 %v192
    %949 = vmatprep.subr.bf16.mxu0 %v191
    %950 = vmatpush1.bf16.msra.mxu0 %v190
    %951 = vmatprep.subr.bf16.mxu0 %v189
    %952 = vmatpush1.bf16.msra.mxu0 %v188
    %953 = vmatprep.subr.bf16.mxu0 0
    %954 = vmatpush2.bf16.msra.mxu0 0
    %955 = vmatprep.subr.bf16.mxu0 0
    %956 = vmatpush2.bf16.msra.mxu0 0
    %957 = vmatprep.subr.bf16.mxu0 0
    %958 = vmatpush2.bf16.msra.mxu0 0
    %959 = vmatprep.subr.bf16.mxu0 0
    %960 = vmatpush2.bf16.msra.mxu0 0
    %961 = vmatprep.subr.bf16.mxu0 0
    %962 = vmatpush2.bf16.msra.mxu0 0
    %963 = vmatprep.subr.bf16.mxu0 0
    %964 = vmatpush2.bf16.msra.mxu0 0
    %965 = vmatprep.subr.bf16.mxu0 0
    %966 = vmatpush2.bf16.msra.mxu0 0
    %967 = vmatprep.subr.bf16.mxu0 0
    %968 = vmatpush2.bf16.msra.mxu0 0
    %969 = vmatprep.mubr.bf16.mxu0 0
    %970 = vmatmul.mubr.bf16.gmra.mxu0 %v935
    %v971 = vpop.f32.mrf.mxu0
    %v972 = vadd.f32 %v99, %v971
    %v973 = vpop.f32.mrf.mxu0
    %v974 = vadd.f32 %v103, %v973
    %v975 = vpop.f32.mrf.mxu0
    %v976 = vpop.f32.mrf.mxu0
    %977 = vdwg.mxu0
    %v978 = vxor.u32 %v972, 2147483648
    %v979 = vmul.f32 %v978, 1.442695
    %v980 = vpow.pop %v979
    %v981 = vadd.f32 %v980, 1.0
    %v982 = vrcp.pop %v981
    %v983 = vmul.f32 1.0, %v982
    %v984 = vtanh.pop %v974
    %v985 = vxor.u32 %v974, 2147483648
    %v986 = vmul.f32 %v985, 1.442695
    %v987 = vpow.pop %v986
    %v988 = vadd.f32 %v987, 1.0
    %v989 = vrcp.pop %v988
    %v990 = vmul.f32 1.0, %v989
    %v991 = vmul.f32 %v983, %v896
    %v992 = vmul.f32 %v983, %v984
    %994 = vrot.lane.b32.xlu0 %v992, 64
    %v995 = vpop.permute.xlu0 %994
    %v997 = vadd.f32 %v991, %v995
    %v998 = vtanh.pop %v997
    %v999 = vmul.f32 %v990, %v998
    %1001 = vrot.lane.b32.xlu0 %v999, 64
    %v1002 = vpop.permute.xlu0 %1001
    %s1004 = scalar_lea.vmem [#allocation10], 14
    %1005 = vst.msk [vmem:[%s1004] sm:$0x3] %vm291, %v1002
    %1006 = vrot.lane.b32.xlu0 %v999, 32
    %v1007 = vpop.permute.xlu0 %1006
    %1009 = vst.msk [vmem:[#allocation11] sm:$0x3] %vm291, %v1007
    %vm1010 = vcmask 517120
    %1011 = vst.msk [vmem:[#allocation2] sm:$0x3] %vm1010, %v1002
    %1013 = vrot.lane.b32.xlu0 %v997, 64
    %v1014 = vpop.permute.xlu0 %1013
    %1016 = vst.msk [vmem:[#allocation3] sm:$0x3] %vm1010, %v1014
    // Predicated region
    $region34: #{tpu_custom_call.1} parent=1 // pred_check
      _
    $region35: #{tpu_custom_call.1} parent=1 // pred_check_branch
      %1018 = sbr.rel (0) target = $region37
    $region36: #{tpu_custom_call.1} parent=1 // pred_region
      %s1020 = ssub.s32 256, 256
      %1021 = vsyncadd [#allocation6], %s1020
      %s1022 = sshll.u32 [#allocation10], 4
      %s1023 = int_to_ptr.vmem [resolvable:$true] %s1022
      %1028 = dma.vmem_to_hbm [thread:$0]  %s1023, 256, %s4, [#allocation6], 32, 32, 2
    $region37: #{tpu_custom_call.1} parent=1 // pred_fallthru
      _
    // Predicated region
    $region38: #{tpu_custom_call.1} parent=1 // pred_check
      _
    $region39: #{tpu_custom_call.1} parent=1 // pred_check_branch
      %1030 = sbr.rel (0) target = $region41
    $region40: #{tpu_custom_call.1} parent=1 // pred_region
      %s1031 = ssub.s32 0, 0
      %s1032 = smul.u32 8, %s1031
      %s1034 = ssub.s32 256, 256
      %1035 = vsyncadd [#allocation12], %s1034
      %s1036 = smul.addr %s1032, 32
      %s1037 = scalar_lea.hbm %s5, %s1036
      %s1038 = sshll.u32 [#allocation11], 4
      %s1039 = int_to_ptr.vmem [resolvable:$true] %s1038
      %1044 = dma.vmem_to_hbm [thread:$0]  %s1039, 256, %s1037, [#allocation12], 32, 32, 2
    $region41: #{tpu_custom_call.1} parent=1 // pred_fallthru
      _
    // Predicated region
    $region42: #{tpu_custom_call.1} parent=1 // pred_check
      _
    $region43: #{tpu_custom_call.1} parent=1 // pred_check_branch
      %1046 = sbr.rel (0) target = $region45
    $region44: #{tpu_custom_call.1} parent=1 // pred_region
      %1047 = dma.done [#allocation6], 256
    $region45: #{tpu_custom_call.1} parent=1 // pred_fallthru
      _
    // Predicated region
    $region46: #{tpu_custom_call.1} parent=1 // pred_check
      _
    $region47: #{tpu_custom_call.1} parent=1 // pred_check_branch
      %1049 = sbr.rel (0) target = $region49
    $region48: #{tpu_custom_call.1} parent=1 // pred_region
      %1050 = dma.done [#allocation12], 256
    $region49: #{tpu_custom_call.1} parent=1 // pred_fallthru
      _
    %1051 = vsyncpa [#allocation5], 1
    %1052 = vsyncpa [#allocation8], 1
    %1053 = vsyncpa [#allocation6], 1
    %1054 = vsyncpa [#allocation12], 1

</llo_original>
